<compile_context>
chip_gen: v7x
topology: tpu7x:2x2x1
jax: 0.10.0
libtpu: 0.0.40
codegen_flags: <defaults>
</compile_context>

<pallas_src>
import functools

import jax
import jax.numpy as jnp
import numpy as np
from jax.experimental import pallas as pl
from jax.experimental.pallas import tpu as pltpu


def _round_up(n, m):
    return (n + m - 1) // m * m


# ----------------------------- Pallas kernel -----------------------------

def _causal_conv_im2col(x, w_ref, b_ref, pos, *, dilation, ksize, seq_len,
                        matmul_dtype, relu):
    """One causal dilated Conv1d as a single MXU matmul (im2col over taps).

    x      : (C_in, lanes) f32 value; lanes = b_tile*L (batch folded in lanes)
    w_ref  : (C_out, K*C_in) packed weight ref (tap-major), dtype=matmul_dtype
    b_ref  : (C_out, lanes) pre-broadcast bias ref, f32
    pos    : (1, lanes) int32 lane position within its batch segment
    """
    windows = []
    for j in range(ksize):
        shift = (ksize - 1 - j) * dilation
        if shift == 0:
            win = x
        elif shift >= seq_len:
            # Entire receptive window falls in the causal left padding.
            win = jnp.zeros_like(x)
        else:
            # Right-shift along lanes (XLU rotate), then zero the first
            # `shift` lanes of every batch segment (causal zero fill + stops
            # cross-batch leakage at segment boundaries).
            shifted = pltpu.roll(x, shift, axis=1)
            win = jnp.where(pos < shift, 0.0, shifted)
        windows.append(win)

    stacked = jnp.concatenate(windows, axis=0).astype(matmul_dtype)  # (K*C_in, lanes)
    acc = jnp.dot(w_ref[...], stacked, preferred_element_type=jnp.float32)
    acc = acc + b_ref[...]                                           # f32 bias add
    return jnp.maximum(acc, 0.0) if relu else acc


def _tcn_fused_kernel(*refs, block_meta, ksize, seq_len, lanes, matmul_dtype):
    # refs = (x_ref, <per-block packed weight/bias refs...>, o_ref)
    x_ref = refs[0]
    o_ref = refs[-1]
    w_refs = refs[1:-1]

    # Lane position within each batch segment; computed once, reused by every
    # conv in every residual block.
    lane = jax.lax.broadcasted_iota(jnp.int32, (1, lanes), 1)
    if (seq_len & (seq_len - 1)) == 0:          # power of two -> cheap VPU and
        pos = jnp.bitwise_and(lane, seq_len - 1)
    else:
        pos = jax.lax.rem(lane, seq_len)

    h = x_ref[...].astype(jnp.float32)          # (C0p, lanes), stays in vregs

    idx = 0
    for dilation, has_down, last in block_meta:
        w1, b1, w2, b2 = w_refs[idx:idx + 4]
        idx += 4
        if has_down:                             # 1x1 downsample conv
            wd, bd = w_refs[idx], w_refs[idx + 1]
            idx += 2
            res = jnp.dot(wd[...], h.astype(matmul_dtype),
                          preferred_element_type=jnp.float32) + bd[...]
        else:
            res = h
        out = _causal_conv_im2col(h, w1, b1, pos, dilation=dilation,
                                  ksize=ksize, seq_len=seq_len,
                                  matmul_dtype=matmul_dtype, relu=True)
        out = _causal_conv_im2col(out, w2, b2, pos, dilation=dilation,
                                  ksize=ksize, seq_len=seq_len,
                                  matmul_dtype=matmul_dtype, relu=not last)
        h = out + res                            # residual add in f32
    o_ref[...] = h.astype(o_ref.dtype)


# ----------------------------- wrapper -----------------------------

def tcn_forward(params, x, cfg, *, matmul_dtype=jnp.float32, b_tile=None,
                vmem_limit_bytes=32 * 1024 * 1024):
    """TCN.forward.  x: (B, initial_channels, L) -> (B, out_channels, L)."""
    assert cfg['stride'] == 1, "residual add requires stride == 1"
    B, c0, L = x.shape
    K = cfg['kernel_size']
    blocks = params['blocks']

    if b_tile is None:
        b_tile = B                              # fold the whole batch into lanes
    assert B % b_tile == 0
    lanes = b_tile * L
    assert lanes % 128 == 0, "b_tile * seq_len must be a multiple of 128 (lane-dense)"

    c_last = blocks[-1]['w2'].shape[1]
    c0p = _round_up(c0, 8)                      # pad input channels to a sublane tile

    # ---- host-side layout plumbing (cheap, keeps the kernel lane-dense) ----
    # (B, C, L) -> (C, B*L): batch folded into the lane axis.
    x_f = jnp.transpose(x, (1, 0, 2)).reshape(c0, B * L)
    if c0p != c0:
        x_f = jnp.pad(x_f, ((0, c0p - c0), (0, 0)))

    def pack_conv_w(w_koi, c_in_pad):           # (K,C_out,C_in) -> (C_out,K*C_in_pad)
        k, c_out, c_in = w_koi.shape
        if c_in_pad != c_in:
            w_koi = jnp.pad(w_koi, ((0, 0), (0, 0), (0, c_in_pad - c_in)))
        return (jnp.transpose(w_koi, (1, 0, 2))
                .reshape(c_out, k * c_in_pad).astype(matmul_dtype))

    def bcast_bias(b):                          # (C_out,1) -> (C_out,lanes), f32
        return jnp.broadcast_to(b, (b.shape[0], lanes)).astype(jnp.float32)

    inputs = [x_f]
    in_specs = [pl.BlockSpec((c0p, lanes), lambda i: (0, i))]

    def add_const(arr):
        # Constant across the grid.  With the whole batch folded into a single
        # grid step (demo config) the weights are only loaded once anyway.
        inputs.append(arr)
        in_specs.append(pl.BlockSpec(arr.shape, lambda i: (0, 0)))

    block_meta = []
    in_ch, in_ch_pad = c0, c0p
    for bp in blocks:
        block_meta.append((bp['dilation'], 'wd' in bp, bp['last']))
        c_out = bp['w1'].shape[1]
        add_const(pack_conv_w(bp['w1'], in_ch_pad))
        add_const(bcast_bias(bp['b1']))
        add_const(pack_conv_w(bp['w2'], c_out))
        add_const(bcast_bias(bp['b2']))
        if 'wd' in bp:
            wd = bp['wd']
            if in_ch_pad != in_ch:
                wd = jnp.pad(wd, ((0, 0), (0, in_ch_pad - in_ch)))
            add_const(wd.astype(matmul_dtype))
            add_const(bcast_bias(bp['bd']))
        in_ch, in_ch_pad = c_out, c_out

    # ---- VMEM budget check (double-buffered blocks + replicated constants) ----
    in_block_bytes = c0p * lanes * x.dtype.itemsize
    out_block_bytes = c_last * lanes * x.dtype.itemsize
    const_bytes = sum(int(a.size) * a.dtype.itemsize for a in inputs[1:])
    vmem_est = 2 * (in_block_bytes + out_block_bytes + const_bytes)
    assert vmem_est <= vmem_limit_bytes, (
        f"estimated VMEM {vmem_est} B exceeds limit {vmem_limit_bytes} B; "
        "tile the sequence axis (with a (K-1)*d_max halo) or reduce b_tile")

    kern = functools.partial(_tcn_fused_kernel, block_meta=tuple(block_meta),
                             ksize=K, seq_len=L, lanes=lanes,
                             matmul_dtype=matmul_dtype)

    out_f = pl.pallas_call(
        kern,
        out_shape=jax.ShapeDtypeStruct((c_last, B * L), x.dtype),
        grid=(B // b_tile,),
        in_specs=in_specs,
        out_specs=pl.BlockSpec((c_last, lanes), lambda i: (0, i)),
        compiler_params=pltpu.CompilerParams(
            dimension_semantics=("parallel",),
            vmem_limit_bytes=vmem_limit_bytes),
    )(*inputs)

    # (C, B*L) -> (B, C, L)
    return jnp.transpose(out_f.reshape(c_last, B, L), (1, 0, 2))


# ----------------------------- reference (pure JAX) -----------------------------

def _ref_causal_conv(x, w_koi, b, dilation, relu):
    w = jnp.transpose(w_koi, (1, 2, 0))                  # (C_out, C_in, K)
    K = w.shape[2]
    pad = (K - 1) * dilation
    y = jax.lax.conv_general_dilated(
        x, w, window_strides=(1,), padding=[(pad, 0)],
        rhs_dilation=(dilation,), dimension_numbers=('NCH', 'OIH', 'NCH'))
    y = y + b[None, :, :]
    return jnp.maximum(y, 0.0) if relu else y


def ref_forward(params, x):
    h = x
    for bp in params['blocks']:
        out = _ref_causal_conv(h, bp['w1'], bp['b1'], bp['dilation'], relu=True)
        out = _ref_causal_conv(out, bp['w2'], bp['b2'], bp['dilation'],
                               relu=not bp['last'])
        if 'wd' in bp:
            res = jnp.einsum('oc,bcl->bol', bp['wd'], h) + bp['bd'][None]
        else:
            res = h
        h = out + res
    return h


# ----------------------------- parameter init -----------------------------

def init_res_block(key, c_in, c_out, k, dilation, last):
    ks = jax.random.split(key, 6)
    # weights stored in (K, C_out, C_in) layout; packed for the kernel in the wrapper
    p = {'dilation': int(dilation), 'last': bool(last),
         'w1': 0.01 * jax.random.normal(ks[0], (k, c_out, c_in), jnp.float32),
         'b1': 0.01 * jax.random.normal(ks[1], (c_out, 1), jnp.float32),
         'w2': 0.01 * jax.random.normal(ks[2], (k, c_out, c_out), jnp.float32),
         'b2': 0.01 * jax.random.normal(ks[3], (c_out, 1), jnp.float32)}
    if c_in != c_out:                                    # 1x1 downsample conv
        p['wd'] = 0.01 * jax.random.normal(ks[4], (c_out, c_in), jnp.float32)
        p['bd'] = 0.01 * jax.random.normal(ks[5], (c_out, 1), jnp.float32)
    return p


def build_params(key, cfg):
    nb = cfg['nb_blocks']
    keys = jax.random.split(key, nb)
    d, k = cfg['dilatation'], cfg['kernel_size']
    blocks = [init_res_block(keys[0], cfg['initial_channels'],
                             cfg['latent_channels'], k, d ** 0, last=False)]
    for i in range(nb - 2):
        blocks.append(init_res_block(keys[i + 1], cfg['latent_channels'],
                                     cfg['latent_channels'], k, d ** (i + 1),
                                     last=False))
    blocks.append(init_res_block(keys[-1], cfg['latent_channels'],
                                 cfg['out_channels'], k, d ** (nb - 1),
                                 last=True))
    return {'blocks': blocks}


# ----------------------------- main -----------------------------

if __name__ == "__main__":
    cfg = dict(initial_channels=4, latent_channels=8, out_channels=16,
               kernel_size=3, stride=1, dilatation=2, dropout=0.0, nb_blocks=3,
               seq_len=128)   # seq_len multiple of 128 keeps lanes dense
    key = jax.random.PRNGKey(0)
    kp, kx = jax.random.split(key)
    params = build_params(kp, cfg)

    B = 2
    x = jax.random.normal(kx, (B, cfg['initial_channels'], cfg['seq_len']),
                          jnp.float32)

    ref = ref_forward(params, x)

    # f32 MXU operands: exact-parity path.
    out = jax.block_until_ready(tcn_forward(params, x, cfg))
    assert out.shape == (B, cfg['out_channels'], cfg['seq_len'])
    np.testing.assert_allclose(np.asarray(out), np.asarray(ref),
                               atol=1e-5, rtol=1e-5)

    # bf16 MXU operands (v6e/v7x fast path): relaxed tolerance (bf16 mantissa).
    out_bf16 = jax.block_until_ready(
        tcn_forward(params, x, cfg, matmul_dtype=jnp.bfloat16))
    np.testing.assert_allclose(np.asarray(out_bf16), np.asarray(ref),
                               atol=5e-3, rtol=2e-2)

    print("KERNEL_OK")
</pallas_src>

<mosaic_0001>
module attributes {stable_mosaic.version = 11 : i64} {
  func.func @_tcn_fused_kernel(%arg0: i32, %arg1: memref<8x256xf32, #tpu.memory_space<vmem>>, %arg2: memref<8x24xf32, #tpu.memory_space<vmem>>, %arg3: memref<8x256xf32, #tpu.memory_space<vmem>>, %arg4: memref<8x24xf32, #tpu.memory_space<vmem>>, %arg5: memref<8x256xf32, #tpu.memory_space<vmem>>, %arg6: memref<8x8xf32, #tpu.memory_space<vmem>>, %arg7: memref<8x256xf32, #tpu.memory_space<vmem>>, %arg8: memref<8x24xf32, #tpu.memory_space<vmem>>, %arg9: memref<8x256xf32, #tpu.memory_space<vmem>>, %arg10: memref<8x24xf32, #tpu.memory_space<vmem>>, %arg11: memref<8x256xf32, #tpu.memory_space<vmem>>, %arg12: memref<16x24xf32, #tpu.memory_space<vmem>>, %arg13: memref<16x256xf32, #tpu.memory_space<vmem>>, %arg14: memref<16x48xf32, #tpu.memory_space<vmem>>, %arg15: memref<16x256xf32, #tpu.memory_space<vmem>>, %arg16: memref<16x8xf32, #tpu.memory_space<vmem>>, %arg17: memref<16x256xf32, #tpu.memory_space<vmem>>, %arg18: memref<16x256xf32, #tpu.memory_space<vmem>>) attributes {dimension_semantics = [#tpu.dimension_semantics<parallel>], iteration_bounds = array<i64: 1>, scalar_prefetch = 0 : i64, scratch_operands = 0 : i64, tpu.core_type = #tpu.core_type<tc>, window_params = [{transform_indices = @transform_0, window_bounds = array<i64: 8, 256>}, {pipeline_mode = #tpu.pipeline_mode<synchronous>, transform_indices = @transform_1, window_bounds = array<i64: 8, 24>}, {pipeline_mode = #tpu.pipeline_mode<synchronous>, transform_indices = @transform_2, window_bounds = array<i64: 8, 256>}, {pipeline_mode = #tpu.pipeline_mode<synchronous>, transform_indices = @transform_3, window_bounds = array<i64: 8, 24>}, {pipeline_mode = #tpu.pipeline_mode<synchronous>, transform_indices = @transform_4, window_bounds = array<i64: 8, 256>}, {pipeline_mode = #tpu.pipeline_mode<synchronous>, transform_indices = @transform_5, window_bounds = array<i64: 8, 8>}, {pipeline_mode = #tpu.pipeline_mode<synchronous>, transform_indices = @transform_6, window_bounds = array<i64: 8, 256>}, {pipeline_mode = #tpu.pipeline_mode<synchronous>, transform_indices = @transform_7, window_bounds = array<i64: 8, 24>}, {pipeline_mode = #tpu.pipeline_mode<synchronous>, transform_indices = @transform_8, window_bounds = array<i64: 8, 256>}, {pipeline_mode = #tpu.pipeline_mode<synchronous>, transform_indices = @transform_9, window_bounds = array<i64: 8, 24>}, {pipeline_mode = #tpu.pipeline_mode<synchronous>, transform_indices = @transform_10, window_bounds = array<i64: 8, 256>}, {pipeline_mode = #tpu.pipeline_mode<synchronous>, transform_indices = @transform_11, window_bounds = array<i64: 16, 24>}, {pipeline_mode = #tpu.pipeline_mode<synchronous>, transform_indices = @transform_12, window_bounds = array<i64: 16, 256>}, {pipeline_mode = #tpu.pipeline_mode<synchronous>, transform_indices = @transform_13, window_bounds = array<i64: 16, 48>}, {pipeline_mode = #tpu.pipeline_mode<synchronous>, transform_indices = @transform_14, window_bounds = array<i64: 16, 256>}, {pipeline_mode = #tpu.pipeline_mode<synchronous>, transform_indices = @transform_15, window_bounds = array<i64: 16, 8>}, {pipeline_mode = #tpu.pipeline_mode<synchronous>, transform_indices = @transform_16, window_bounds = array<i64: 16, 256>}, {transform_indices = @transform_17, window_bounds = array<i64: 16, 256>}]} {
    %0 = tpu.iota {dimensions = array<i32: 1>} : vector<1x256xi32>
    %c127_i32 = arith.constant 127 : i32
    %1 = vector.broadcast %c127_i32 : i32 to vector<1x256xi32>
    %2 = arith.andi %0, %1 : vector<1x256xi32>
    %c0 = arith.constant 0 : index
    %c0_0 = arith.constant 0 : index
    %3 = vector.load %arg1[%c0, %c0_0] : memref<8x256xf32, #tpu.memory_space<vmem>>, vector<8x256xf32>
    %c0_1 = arith.constant 0 : index
    %c0_2 = arith.constant 0 : index
    %4 = vector.load %arg6[%c0_1, %c0_2] : memref<8x8xf32, #tpu.memory_space<vmem>>, vector<8x8xf32>
    %cst = arith.constant dense<0.000000e+00> : vector<8x256xf32>
    %5 = tpu.matmul %4, %3, %cst {dimension_numbers = #tpu.dot_dimension_numbers<[1], [0], [0], [1], [0, 0, 1, 1], [], []>} : vector<8x8xf32>, vector<8x256xf32>, vector<8x256xf32> -> vector<8x256xf32>
    %c0_3 = arith.constant 0 : index
    %c0_4 = arith.constant 0 : index
    %6 = vector.load %arg7[%c0_3, %c0_4] : memref<8x256xf32, #tpu.memory_space<vmem>>, vector<8x256xf32>
    %7 = arith.addf %5, %6 : vector<8x256xf32>
    %c2_i32 = arith.constant 2 : i32
    %8 = tpu.dynamic_rotate %3 by %c2_i32 dim 1 : vector<8x256xf32>, i32 -> vector<8x256xf32>
    %c2_i32_5 = arith.constant 2 : i32
    %9 = vector.broadcast %c2_i32_5 : i32 to vector<1x256xi32>
    %10 = arith.cmpi slt, %2, %9 : vector<1x256xi32>
    %cst_6 = arith.constant 0.000000e+00 : f32
    %11 = vector.shape_cast %10 : vector<1x256xi1> to vector<1x256xi1>
    %12 = vector.broadcast %11 : vector<1x256xi1> to vector<8x256xi1>
    %13 = vector.broadcast %cst_6 : f32 to vector<8x256xf32>
    %14 = arith.select %12, %13, %8 : vector<8x256xi1>, vector<8x256xf32>
    %c1_i32 = arith.constant 1 : i32
    %15 = tpu.dynamic_rotate %3 by %c1_i32 dim 1 : vector<8x256xf32>, i32 -> vector<8x256xf32>
    %c1_i32_7 = arith.constant 1 : i32
    %16 = vector.broadcast %c1_i32_7 : i32 to vector<1x256xi32>
    %17 = arith.cmpi slt, %2, %16 : vector<1x256xi32>
    %cst_8 = arith.constant 0.000000e+00 : f32
    %18 = vector.shape_cast %17 : vector<1x256xi1> to vector<1x256xi1>
    %19 = vector.broadcast %18 : vector<1x256xi1> to vector<8x256xi1>
    %20 = vector.broadcast %cst_8 : f32 to vector<8x256xf32>
    %21 = arith.select %19, %20, %15 : vector<8x256xi1>, vector<8x256xf32>
    %22 = tpu.concatenate %14, %21, %3 in 0 : vector<8x256xf32>, vector<8x256xf32>, vector<8x256xf32> -> vector<24x256xf32>
    %c0_9 = arith.constant 0 : index
    %c0_10 = arith.constant 0 : index
    %23 = vector.load %arg2[%c0_9, %c0_10] : memref<8x24xf32, #tpu.memory_space<vmem>>, vector<8x24xf32>
    %cst_11 = arith.constant dense<0.000000e+00> : vector<8x256xf32>
    %24 = tpu.matmul %23, %22, %cst_11 {dimension_numbers = #tpu.dot_dimension_numbers<[1], [0], [0], [1], [0, 0, 1, 1], [], []>} : vector<8x24xf32>, vector<24x256xf32>, vector<8x256xf32> -> vector<8x256xf32>
    %c0_12 = arith.constant 0 : index
    %c0_13 = arith.constant 0 : index
    %25 = vector.load %arg3[%c0_12, %c0_13] : memref<8x256xf32, #tpu.memory_space<vmem>>, vector<8x256xf32>
    %26 = arith.addf %24, %25 : vector<8x256xf32>
    %cst_14 = arith.constant 0.000000e+00 : f32
    %27 = vector.broadcast %cst_14 : f32 to vector<8x256xf32>
    %28 = arith.maximumf %26, %27 : vector<8x256xf32>
    %c2_i32_15 = arith.constant 2 : i32
    %29 = tpu.dynamic_rotate %28 by %c2_i32_15 dim 1 : vector<8x256xf32>, i32 -> vector<8x256xf32>
    %c2_i32_16 = arith.constant 2 : i32
    %30 = vector.broadcast %c2_i32_16 : i32 to vector<1x256xi32>
    %31 = arith.cmpi slt, %2, %30 : vector<1x256xi32>
    %cst_17 = arith.constant 0.000000e+00 : f32
    %32 = vector.shape_cast %31 : vector<1x256xi1> to vector<1x256xi1>
    %33 = vector.broadcast %32 : vector<1x256xi1> to vector<8x256xi1>
    %34 = vector.broadcast %cst_17 : f32 to vector<8x256xf32>
    %35 = arith.select %33, %34, %29 : vector<8x256xi1>, vector<8x256xf32>
    %c1_i32_18 = arith.constant 1 : i32
    %36 = tpu.dynamic_rotate %28 by %c1_i32_18 dim 1 : vector<8x256xf32>, i32 -> vector<8x256xf32>
    %c1_i32_19 = arith.constant 1 : i32
    %37 = vector.broadcast %c1_i32_19 : i32 to vector<1x256xi32>
    %38 = arith.cmpi slt, %2, %37 : vector<1x256xi32>
    %cst_20 = arith.constant 0.000000e+00 : f32
    %39 = vector.shape_cast %38 : vector<1x256xi1> to vector<1x256xi1>
    %40 = vector.broadcast %39 : vector<1x256xi1> to vector<8x256xi1>
    %41 = vector.broadcast %cst_20 : f32 to vector<8x256xf32>
    %42 = arith.select %40, %41, %36 : vector<8x256xi1>, vector<8x256xf32>
    %43 = tpu.concatenate %35, %42, %28 in 0 : vector<8x256xf32>, vector<8x256xf32>, vector<8x256xf32> -> vector<24x256xf32>
    %c0_21 = arith.constant 0 : index
    %c0_22 = arith.constant 0 : index
    %44 = vector.load %arg4[%c0_21, %c0_22] : memref<8x24xf32, #tpu.memory_space<vmem>>, vector<8x24xf32>
    %cst_23 = arith.constant dense<0.000000e+00> : vector<8x256xf32>
    %45 = tpu.matmul %44, %43, %cst_23 {dimension_numbers = #tpu.dot_dimension_numbers<[1], [0], [0], [1], [0, 0, 1, 1], [], []>} : vector<8x24xf32>, vector<24x256xf32>, vector<8x256xf32> -> vector<8x256xf32>
    %c0_24 = arith.constant 0 : index
    %c0_25 = arith.constant 0 : index
    %46 = vector.load %arg5[%c0_24, %c0_25] : memref<8x256xf32, #tpu.memory_space<vmem>>, vector<8x256xf32>
    %47 = arith.addf %45, %46 : vector<8x256xf32>
    %cst_26 = arith.constant 0.000000e+00 : f32
    %48 = vector.broadcast %cst_26 : f32 to vector<8x256xf32>
    %49 = arith.maximumf %47, %48 : vector<8x256xf32>
    %50 = arith.addf %49, %7 : vector<8x256xf32>
    %c4_i32 = arith.constant 4 : i32
    %51 = tpu.dynamic_rotate %50 by %c4_i32 dim 1 : vector<8x256xf32>, i32 -> vector<8x256xf32>
    %c4_i32_27 = arith.constant 4 : i32
    %52 = vector.broadcast %c4_i32_27 : i32 to vector<1x256xi32>
    %53 = arith.cmpi slt, %2, %52 : vector<1x256xi32>
    %cst_28 = arith.constant 0.000000e+00 : f32
    %54 = vector.shape_cast %53 : vector<1x256xi1> to vector<1x256xi1>
    %55 = vector.broadcast %54 : vector<1x256xi1> to vector<8x256xi1>
    %56 = vector.broadcast %cst_28 : f32 to vector<8x256xf32>
    %57 = arith.select %55, %56, %51 : vector<8x256xi1>, vector<8x256xf32>
    %c2_i32_29 = arith.constant 2 : i32
    %58 = tpu.dynamic_rotate %50 by %c2_i32_29 dim 1 : vector<8x256xf32>, i32 -> vector<8x256xf32>
    %c2_i32_30 = arith.constant 2 : i32
    %59 = vector.broadcast %c2_i32_30 : i32 to vector<1x256xi32>
    %60 = arith.cmpi slt, %2, %59 : vector<1x256xi32>
    %cst_31 = arith.constant 0.000000e+00 : f32
    %61 = vector.shape_cast %60 : vector<1x256xi1> to vector<1x256xi1>
    %62 = vector.broadcast %61 : vector<1x256xi1> to vector<8x256xi1>
    %63 = vector.broadcast %cst_31 : f32 to vector<8x256xf32>
    %64 = arith.select %62, %63, %58 : vector<8x256xi1>, vector<8x256xf32>
    %65 = tpu.concatenate %57, %64, %50 in 0 : vector<8x256xf32>, vector<8x256xf32>, vector<8x256xf32> -> vector<24x256xf32>
    %c0_32 = arith.constant 0 : index
    %c0_33 = arith.constant 0 : index
    %66 = vector.load %arg8[%c0_32, %c0_33] : memref<8x24xf32, #tpu.memory_space<vmem>>, vector<8x24xf32>
    %cst_34 = arith.constant dense<0.000000e+00> : vector<8x256xf32>
    %67 = tpu.matmul %66, %65, %cst_34 {dimension_numbers = #tpu.dot_dimension_numbers<[1], [0], [0], [1], [0, 0, 1, 1], [], []>} : vector<8x24xf32>, vector<24x256xf32>, vector<8x256xf32> -> vector<8x256xf32>
    %c0_35 = arith.constant 0 : index
    %c0_36 = arith.constant 0 : index
    %68 = vector.load %arg9[%c0_35, %c0_36] : memref<8x256xf32, #tpu.memory_space<vmem>>, vector<8x256xf32>
    %69 = arith.addf %67, %68 : vector<8x256xf32>
    %cst_37 = arith.constant 0.000000e+00 : f32
    %70 = vector.broadcast %cst_37 : f32 to vector<8x256xf32>
    %71 = arith.maximumf %69, %70 : vector<8x256xf32>
    %c4_i32_38 = arith.constant 4 : i32
    %72 = tpu.dynamic_rotate %71 by %c4_i32_38 dim 1 : vector<8x256xf32>, i32 -> vector<8x256xf32>
    %c4_i32_39 = arith.constant 4 : i32
    %73 = vector.broadcast %c4_i32_39 : i32 to vector<1x256xi32>
    %74 = arith.cmpi slt, %2, %73 : vector<1x256xi32>
    %cst_40 = arith.constant 0.000000e+00 : f32
    %75 = vector.shape_cast %74 : vector<1x256xi1> to vector<1x256xi1>
    %76 = vector.broadcast %75 : vector<1x256xi1> to vector<8x256xi1>
    %77 = vector.broadcast %cst_40 : f32 to vector<8x256xf32>
    %78 = arith.select %76, %77, %72 : vector<8x256xi1>, vector<8x256xf32>
    %c2_i32_41 = arith.constant 2 : i32
    %79 = tpu.dynamic_rotate %71 by %c2_i32_41 dim 1 : vector<8x256xf32>, i32 -> vector<8x256xf32>
    %c2_i32_42 = arith.constant 2 : i32
    %80 = vector.broadcast %c2_i32_42 : i32 to vector<1x256xi32>
    %81 = arith.cmpi slt, %2, %80 : vector<1x256xi32>
    %cst_43 = arith.constant 0.000000e+00 : f32
    %82 = vector.shape_cast %81 : vector<1x256xi1> to vector<1x256xi1>
    %83 = vector.broadcast %82 : vector<1x256xi1> to vector<8x256xi1>
    %84 = vector.broadcast %cst_43 : f32 to vector<8x256xf32>
    %85 = arith.select %83, %84, %79 : vector<8x256xi1>, vector<8x256xf32>
    %86 = tpu.concatenate %78, %85, %71 in 0 : vector<8x256xf32>, vector<8x256xf32>, vector<8x256xf32> -> vector<24x256xf32>
    %c0_44 = arith.constant 0 : index
    %c0_45 = arith.constant 0 : index
    %87 = vector.load %arg10[%c0_44, %c0_45] : memref<8x24xf32, #tpu.memory_space<vmem>>, vector<8x24xf32>
    %cst_46 = arith.constant dense<0.000000e+00> : vector<8x256xf32>
    %88 = tpu.matmul %87, %86, %cst_46 {dimension_numbers = #tpu.dot_dimension_numbers<[1], [0], [0], [1], [0, 0, 1, 1], [], []>} : vector<8x24xf32>, vector<24x256xf32>, vector<8x256xf32> -> vector<8x256xf32>
    %c0_47 = arith.constant 0 : index
    %c0_48 = arith.constant 0 : index
    %89 = vector.load %arg11[%c0_47, %c0_48] : memref<8x256xf32, #tpu.memory_space<vmem>>, vector<8x256xf32>
    %90 = arith.addf %88, %89 : vector<8x256xf32>
    %cst_49 = arith.constant 0.000000e+00 : f32
    %91 = vector.broadcast %cst_49 : f32 to vector<8x256xf32>
    %92 = arith.maximumf %90, %91 : vector<8x256xf32>
    %93 = arith.addf %92, %50 : vector<8x256xf32>
    %c0_50 = arith.constant 0 : index
    %c0_51 = arith.constant 0 : index
    %94 = vector.load %arg16[%c0_50, %c0_51] : memref<16x8xf32, #tpu.memory_space<vmem>>, vector<16x8xf32>
    %cst_52 = arith.constant dense<0.000000e+00> : vector<16x256xf32>
    %95 = tpu.matmul %94, %93, %cst_52 {dimension_numbers = #tpu.dot_dimension_numbers<[1], [0], [0], [1], [0, 0, 1, 1], [], []>} : vector<16x8xf32>, vector<8x256xf32>, vector<16x256xf32> -> vector<16x256xf32>
    %c0_53 = arith.constant 0 : index
    %c0_54 = arith.constant 0 : index
    %96 = vector.load %arg17[%c0_53, %c0_54] : memref<16x256xf32, #tpu.memory_space<vmem>>, vector<16x256xf32>
    %97 = arith.addf %95, %96 : vector<16x256xf32>
    %c8_i32 = arith.constant 8 : i32
    %98 = tpu.dynamic_rotate %93 by %c8_i32 dim 1 : vector<8x256xf32>, i32 -> vector<8x256xf32>
    %c8_i32_55 = arith.constant 8 : i32
    %99 = vector.broadcast %c8_i32_55 : i32 to vector<1x256xi32>
    %100 = arith.cmpi slt, %2, %99 : vector<1x256xi32>
    %cst_56 = arith.constant 0.000000e+00 : f32
    %101 = vector.shape_cast %100 : vector<1x256xi1> to vector<1x256xi1>
    %102 = vector.broadcast %101 : vector<1x256xi1> to vector<8x256xi1>
    %103 = vector.broadcast %cst_56 : f32 to vector<8x256xf32>
    %104 = arith.select %102, %103, %98 : vector<8x256xi1>, vector<8x256xf32>
    %c4_i32_57 = arith.constant 4 : i32
    %105 = tpu.dynamic_rotate %93 by %c4_i32_57 dim 1 : vector<8x256xf32>, i32 -> vector<8x256xf32>
    %c4_i32_58 = arith.constant 4 : i32
    %106 = vector.broadcast %c4_i32_58 : i32 to vector<1x256xi32>
    %107 = arith.cmpi slt, %2, %106 : vector<1x256xi32>
    %cst_59 = arith.constant 0.000000e+00 : f32
    %108 = vector.shape_cast %107 : vector<1x256xi1> to vector<1x256xi1>
    %109 = vector.broadcast %108 : vector<1x256xi1> to vector<8x256xi1>
    %110 = vector.broadcast %cst_59 : f32 to vector<8x256xf32>
    %111 = arith.select %109, %110, %105 : vector<8x256xi1>, vector<8x256xf32>
    %112 = tpu.concatenate %104, %111, %93 in 0 : vector<8x256xf32>, vector<8x256xf32>, vector<8x256xf32> -> vector<24x256xf32>
    %c0_60 = arith.constant 0 : index
    %c0_61 = arith.constant 0 : index
    %113 = vector.load %arg12[%c0_60, %c0_61] : memref<16x24xf32, #tpu.memory_space<vmem>>, vector<16x24xf32>
    %cst_62 = arith.constant dense<0.000000e+00> : vector<16x256xf32>
    %114 = tpu.matmul %113, %112, %cst_62 {dimension_numbers = #tpu.dot_dimension_numbers<[1], [0], [0], [1], [0, 0, 1, 1], [], []>} : vector<16x24xf32>, vector<24x256xf32>, vector<16x256xf32> -> vector<16x256xf32>
    %c0_63 = arith.constant 0 : index
    %c0_64 = arith.constant 0 : index
    %115 = vector.load %arg13[%c0_63, %c0_64] : memref<16x256xf32, #tpu.memory_space<vmem>>, vector<16x256xf32>
    %116 = arith.addf %114, %115 : vector<16x256xf32>
    %cst_65 = arith.constant 0.000000e+00 : f32
    %117 = vector.broadcast %cst_65 : f32 to vector<16x256xf32>
    %118 = arith.maximumf %116, %117 : vector<16x256xf32>
    %c8_i32_66 = arith.constant 8 : i32
    %119 = tpu.dynamic_rotate %118 by %c8_i32_66 dim 1 : vector<16x256xf32>, i32 -> vector<16x256xf32>
    %c8_i32_67 = arith.constant 8 : i32
    %120 = vector.broadcast %c8_i32_67 : i32 to vector<1x256xi32>
    %121 = arith.cmpi slt, %2, %120 : vector<1x256xi32>
    %cst_68 = arith.constant 0.000000e+00 : f32
    %122 = vector.shape_cast %121 : vector<1x256xi1> to vector<1x256xi1>
    %123 = vector.broadcast %122 : vector<1x256xi1> to vector<16x256xi1>
    %124 = vector.broadcast %cst_68 : f32 to vector<16x256xf32>
    %125 = arith.select %123, %124, %119 : vector<16x256xi1>, vector<16x256xf32>
    %c4_i32_69 = arith.constant 4 : i32
    %126 = tpu.dynamic_rotate %118 by %c4_i32_69 dim 1 : vector<16x256xf32>, i32 -> vector<16x256xf32>
    %c4_i32_70 = arith.constant 4 : i32
    %127 = vector.broadcast %c4_i32_70 : i32 to vector<1x256xi32>
    %128 = arith.cmpi slt, %2, %127 : vector<1x256xi32>
    %cst_71 = arith.constant 0.000000e+00 : f32
    %129 = vector.shape_cast %128 : vector<1x256xi1> to vector<1x256xi1>
    %130 = vector.broadcast %129 : vector<1x256xi1> to vector<16x256xi1>
    %131 = vector.broadcast %cst_71 : f32 to vector<16x256xf32>
    %132 = arith.select %130, %131, %126 : vector<16x256xi1>, vector<16x256xf32>
    %133 = tpu.concatenate %125, %132, %118 in 0 : vector<16x256xf32>, vector<16x256xf32>, vector<16x256xf32> -> vector<48x256xf32>
    %c0_72 = arith.constant 0 : index
    %c0_73 = arith.constant 0 : index
    %134 = vector.load %arg14[%c0_72, %c0_73] : memref<16x48xf32, #tpu.memory_space<vmem>>, vector<16x48xf32>
    %cst_74 = arith.constant dense<0.000000e+00> : vector<16x256xf32>
    %135 = tpu.matmul %134, %133, %cst_74 {dimension_numbers = #tpu.dot_dimension_numbers<[1], [0], [0], [1], [0, 0, 1, 1], [], []>} : vector<16x48xf32>, vector<48x256xf32>, vector<16x256xf32> -> vector<16x256xf32>
    %c0_75 = arith.constant 0 : index
    %c0_76 = arith.constant 0 : index
    %136 = vector.load %arg15[%c0_75, %c0_76] : memref<16x256xf32, #tpu.memory_space<vmem>>, vector<16x256xf32>
    %137 = arith.addf %135, %136 : vector<16x256xf32>
    %138 = arith.addf %137, %97 : vector<16x256xf32>
    %c0_77 = arith.constant 0 : index
    %c0_78 = arith.constant 0 : index
    %139 = vector.load %arg18[%c0_77, %c0_78] : memref<16x256xf32, #tpu.memory_space<vmem>>, vector<16x256xf32>
    tpu.vector_store %arg18[%c0_77, %c0_78], %138 {strides = array<i32>} : memref<16x256xf32, #tpu.memory_space<vmem>>, vector<16x256xf32>,
    return
  }
  func.func @transform_0(%arg0: i32) -> (i32, i32) {
    %c0_i32 = arith.constant 0 : i32
    %c0_i32_0 = arith.constant 0 : i32
    return %c0_i32, %arg0 : i32, i32
  }
  func.func @transform_1(%arg0: i32) -> (i32, i32) {
    %c0_i32 = arith.constant 0 : i32
    %c0_i32_0 = arith.constant 0 : i32
    %c0_i32_1 = arith.constant 0 : i32
    return %c0_i32, %c0_i32_0 : i32, i32
  }
  func.func @transform_2(%arg0: i32) -> (i32, i32) {
    %c0_i32 = arith.constant 0 : i32
    %c0_i32_0 = arith.constant 0 : i32
    %c0_i32_1 = arith.constant 0 : i32
    return %c0_i32, %c0_i32_0 : i32, i32
  }
  func.func @transform_3(%arg0: i32) -> (i32, i32) {
    %c0_i32 = arith.constant 0 : i32
    %c0_i32_0 = arith.constant 0 : i32
    %c0_i32_1 = arith.constant 0 : i32
    return %c0_i32, %c0_i32_0 : i32, i32
  }
  func.func @transform_4(%arg0: i32) -> (i32, i32) {
    %c0_i32 = arith.constant 0 : i32
    %c0_i32_0 = arith.constant 0 : i32
    %c0_i32_1 = arith.constant 0 : i32
    return %c0_i32, %c0_i32_0 : i32, i32
  }
  func.func @transform_5(%arg0: i32) -> (i32, i32) {
    %c0_i32 = arith.constant 0 : i32
    %c0_i32_0 = arith.constant 0 : i32
    %c0_i32_1 = arith.constant 0 : i32
    return %c0_i32, %c0_i32_0 : i32, i32
  }
  func.func @transform_6(%arg0: i32) -> (i32, i32) {
    %c0_i32 = arith.constant 0 : i32
    %c0_i32_0 = arith.constant 0 : i32
    %c0_i32_1 = arith.constant 0 : i32
    return %c0_i32, %c0_i32_0 : i32, i32
  }
  func.func @transform_7(%arg0: i32) -> (i32, i32) {
    %c0_i32 = arith.constant 0 : i32
    %c0_i32_0 = arith.constant 0 : i32
    %c0_i32_1 = arith.constant 0 : i32
    return %c0_i32, %c0_i32_0 : i32, i32
  }
  func.func @transform_8(%arg0: i32) -> (i32, i32) {
    %c0_i32 = arith.constant 0 : i32
    %c0_i32_0 = arith.constant 0 : i32
    %c0_i32_1 = arith.constant 0 : i32
    return %c0_i32, %c0_i32_0 : i32, i32
  }
  func.func @transform_9(%arg0: i32) -> (i32, i32) {
    %c0_i32 = arith.constant 0 : i32
    %c0_i32_0 = arith.constant 0 : i32
    %c0_i32_1 = arith.constant 0 : i32
    return %c0_i32, %c0_i32_0 : i32, i32
  }
  func.func @transform_10(%arg0: i32) -> (i32, i32) {
    %c0_i32 = arith.constant 0 : i32
    %c0_i32_0 = arith.constant 0 : i32
    %c0_i32_1 = arith.constant 0 : i32
    return %c0_i32, %c0_i32_0 : i32, i32
  }
  func.func @transform_11(%arg0: i32) -> (i32, i32) {
    %c0_i32 = arith.constant 0 : i32
    %c0_i32_0 = arith.constant 0 : i32
    %c0_i32_1 = arith.constant 0 : i32
    return %c0_i32, %c0_i32_0 : i32, i32
  }
  func.func @transform_12(%arg0: i32) -> (i32, i32) {
    %c0_i32 = arith.constant 0 : i32
    %c0_i32_0 = arith.constant 0 : i32
    %c0_i32_1 = arith.constant 0 : i32
    return %c0_i32, %c0_i32_0 : i32, i32
  }
  func.func @transform_13(%arg0: i32) -> (i32, i32) {
    %c0_i32 = arith.constant 0 : i32
    %c0_i32_0 = arith.constant 0 : i32
    %c0_i32_1 = arith.constant 0 : i32
    return %c0_i32, %c0_i32_0 : i32, i32
  }
  func.func @transform_14(%arg0: i32) -> (i32, i32) {
    %c0_i32 = arith.constant 0 : i32
    %c0_i32_0 = arith.constant 0 : i32
    %c0_i32_1 = arith.constant 0 : i32
    return %c0_i32, %c0_i32_0 : i32, i32
  }
  func.func @transform_15(%arg0: i32) -> (i32, i32) {
    %c0_i32 = arith.constant 0 : i32
    %c0_i32_0 = arith.constant 0 : i32
    %c0_i32_1 = arith.constant 0 : i32
    return %c0_i32, %c0_i32_0 : i32, i32
  }
  func.func @transform_16(%arg0: i32) -> (i32, i32) {
    %c0_i32 = arith.constant 0 : i32
    %c0_i32_0 = arith.constant 0 : i32
    %c0_i32_1 = arith.constant 0 : i32
    return %c0_i32, %c0_i32_0 : i32, i32
  }
  func.func @transform_17(%arg0: i32) -> (i32, i32) {
    %c0_i32 = arith.constant 0 : i32
    %c0_i32_0 = arith.constant 0 : i32
    return %c0_i32, %arg0 : i32, i32
  }
}

</mosaic_0001>

<llo_original>
// kernel: tpu_custom_call.1
$region0: #{tpu_custom_call.1}
  #allocation0 [shape = 'u32[]', space=smem, size = 0x4, offset = 0x4, fixed_abs, tag = 'smem constant byte address 0x4 - core index']
  #allocation1 [shape = 'u32[144,128]{1,0:T(1,128)}', space=vmem, size = 0x12000, scoped, tag = 'internal scratch']
  %s0 = inlined_call_operand.hbm [shape: f32[8,256], index: 0, kind: input, shape index: {}]
  %s1 = inlined_call_operand.hbm [shape: f32[8,24], index: 1, kind: input, shape index: {}]
  %s2 = inlined_call_operand.hbm [shape: f32[8,256], index: 2, kind: input, shape index: {}]
  %s3 = inlined_call_operand.hbm [shape: f32[8,24], index: 3, kind: input, shape index: {}]
  %s4 = inlined_call_operand.hbm [shape: f32[8,256], index: 4, kind: input, shape index: {}]
  %s5 = inlined_call_operand.hbm [shape: f32[8,8], index: 5, kind: input, shape index: {}]
  %s6 = inlined_call_operand.hbm [shape: f32[8,256], index: 6, kind: input, shape index: {}]
  %s7 = inlined_call_operand.hbm [shape: f32[8,24], index: 7, kind: input, shape index: {}]
  %s8 = inlined_call_operand.hbm [shape: f32[8,256], index: 8, kind: input, shape index: {}]
  %s9 = inlined_call_operand.hbm [shape: f32[8,24], index: 9, kind: input, shape index: {}]
  %s10 = inlined_call_operand.hbm [shape: f32[8,256], index: 10, kind: input, shape index: {}]
  %s11 = inlined_call_operand.hbm [shape: f32[16,24], index: 11, kind: input, shape index: {}]
  %s12 = inlined_call_operand.vmem [shape: f32[16,256], index: 12, kind: input, shape index: {}]
  %s13 = inlined_call_operand.hbm [shape: f32[16,48], index: 13, kind: input, shape index: {}]
  %s14 = inlined_call_operand.vmem [shape: f32[16,256], index: 14, kind: input, shape index: {}]
  %s15 = inlined_call_operand.vmem [shape: f32[16,8], index: 15, kind: input, shape index: {}]
  %s16 = inlined_call_operand.hbm [shape: f32[16,256], index: 16, kind: input, shape index: {}]
  %s17 = inlined_call_operand.hbm [shape: f32[16,256], index: 17, kind: output, shape index: {}]
  %s18 = sld [smem:[#allocation0]]
  $region134: #{tpu_custom_call.1} parent=0
    _
  %s20 = ssub.s32 1, %s18
  %s21 = scalar_select 0, %s20, %s18
  $region1: #{tpu_custom_call.1} parent=0
    #allocation2 [shape = 'u8[8192]{0}', space=vmem, size = 0x2000, scoped, tag = 'input window, operand 0, single buffered']
    #allocation3 [shape = 's32[1]{0}', space=sflag, size = 0x4, scoped, tag = 'scoped memory for tpu_custom_call.1']
    #allocation4 [shape = 's32[1]{0}', space=sflag, size = 0x4, scoped, tag = 'scoped memory for tpu_custom_call.1']
    #allocation5 [shape = 'u8[4096]{0}', space=vmem, size = 0x1000, scoped, tag = 'input window, operand 1, single buffered']
    #allocation6 [shape = 's32[1]{0}', space=sflag, size = 0x4, scoped, tag = 'scoped memory for tpu_custom_call.1']
    #allocation7 [shape = 'u8[8192]{0}', space=vmem, size = 0x2000, scoped, tag = 'input window, operand 2, single buffered']
    #allocation8 [shape = 'u8[4096]{0}', space=vmem, size = 0x1000, scoped, tag = 'input window, operand 3, single buffered']
    #allocation9 [shape = 's32[1]{0}', space=sflag, size = 0x4, scoped, tag = 'scoped memory for tpu_custom_call.1']
    #allocation10 [shape = 'u8[8192]{0}', space=vmem, size = 0x2000, scoped, tag = 'input window, operand 4, single buffered']
    #allocation11 [shape = 'u8[4096]{0}', space=vmem, size = 0x1000, scoped, tag = 'input window, operand 5, single buffered']
    #allocation12 [shape = 's32[1]{0}', space=sflag, size = 0x4, scoped, tag = 'scoped memory for tpu_custom_call.1']
    #allocation13 [shape = 'u8[8192]{0}', space=vmem, size = 0x2000, scoped, tag = 'input window, operand 6, single buffered']
    #allocation14 [shape = 'u8[4096]{0}', space=vmem, size = 0x1000, scoped, tag = 'input window, operand 7, single buffered']
    #allocation15 [shape = 's32[1]{0}', space=sflag, size = 0x4, scoped, tag = 'scoped memory for tpu_custom_call.1']
    #allocation16 [shape = 'u8[8192]{0}', space=vmem, size = 0x2000, scoped, tag = 'input window, operand 8, single buffered']
    #allocation17 [shape = 'u8[4096]{0}', space=vmem, size = 0x1000, scoped, tag = 'input window, operand 9, single buffered']
    #allocation18 [shape = 's32[1]{0}', space=sflag, size = 0x4, scoped, tag = 'scoped memory for tpu_custom_call.1']
    #allocation19 [shape = 'u8[8192]{0}', space=vmem, size = 0x2000, scoped, tag = 'input window, operand 10, single buffered']
    #allocation20 [shape = 'u8[8192]{0}', space=vmem, size = 0x2000, scoped, tag = 'input window, operand 11, single buffered']
    #allocation21 [shape = 's32[1]{0}', space=sflag, size = 0x4, scoped, tag = 'scoped memory for tpu_custom_call.1']
    #allocation22 [shape = 'u8[8192]{0}', space=vmem, size = 0x2000, scoped, tag = 'input window, operand 13, single buffered']
    #allocation23 [shape = 'u8[16384]{0}', space=vmem, size = 0x4000, scoped, tag = 'input window, operand 16, single buffered']
    #allocation24 [shape = 's32[1]{0}', space=sflag, size = 0x4, scoped, tag = 'scoped memory for tpu_custom_call.1']
    #allocation25 [shape = 'u8[16384]{0}', space=vmem, size = 0x4000, scoped, tag = 'output window, operand 0, single buffered']
    %22 = vsyncpa [#allocation3], 0
    %23 = vsyncpa [#allocation6], 0
    %24 = vsyncpa [#allocation9], 0
    %25 = vsyncpa [#allocation12], 0
    %26 = vsyncpa [#allocation15], 0
    %27 = vsyncpa [#allocation18], 0
    %28 = vsyncpa [#allocation21], 0
    %29 = vsyncpa [#allocation24], 0
    %30 = vsyncpa [#allocation4], 0
    // Predicated region
    $region2: #{tpu_custom_call.1} parent=1 // pred_check
      _
    $region3: #{tpu_custom_call.1} parent=1 // pred_check_branch
      %32 = sbr.rel (0) target = $region5
    $region4: #{tpu_custom_call.1} parent=1 // pred_region
      %s34 = ssub.s32 256, 256
      %35 = vsyncadd [#allocation3], %s34
      %s37 = sshll.u32 [#allocation2], 4
      %s38 = int_to_ptr.vmem [resolvable:$true] %s37
      %40 = dma.hbm_to_vmem [thread:$0]  %s0, 256, %s38, [#allocation3]
    $region5: #{tpu_custom_call.1} parent=1 // pred_fallthru
      _
    // Predicated region
    $region6: #{tpu_custom_call.1} parent=1 // pred_check
      _
    $region7: #{tpu_custom_call.1} parent=1 // pred_check_branch
      %42 = sbr.rel (0) target = $region9
    $region8: #{tpu_custom_call.1} parent=1 // pred_region
      %s44 = ssub.s32 128, 128
      %45 = vsyncadd [#allocation6], %s44
      %s47 = sshll.u32 [#allocation5], 4
      %s48 = int_to_ptr.vmem [resolvable:$true] %s47
      %50 = dma.hbm_to_vmem [thread:$0]  %s1, 128, %s48, [#allocation6]
    $region9: #{tpu_custom_call.1} parent=1 // pred_fallthru
      _
    // Predicated region
    $region10: #{tpu_custom_call.1} parent=1 // pred_check
      _
    $region11: #{tpu_custom_call.1} parent=1 // pred_check_branch
      %52 = sbr.rel (0) target = $region13
    $region12: #{tpu_custom_call.1} parent=1 // pred_region
      %s54 = ssub.s32 256, 256
      %55 = vsyncadd [#allocation6], %s54
      %s57 = sshll.u32 [#allocation7], 4
      %s58 = int_to_ptr.vmem [resolvable:$true] %s57
      %60 = dma.hbm_to_vmem [thread:$0]  %s2, 256, %s58, [#allocation6]
    $region13: #{tpu_custom_call.1} parent=1 // pred_fallthru
      _
    // Predicated region
    $region14: #{tpu_custom_call.1} parent=1 // pred_check
      _
    $region15: #{tpu_custom_call.1} parent=1 // pred_check_branch
      %62 = sbr.rel (0) target = $region17
    $region16: #{tpu_custom_call.1} parent=1 // pred_region
      %s64 = ssub.s32 128, 128
      %65 = vsyncadd [#allocation9], %s64
      %s67 = sshll.u32 [#allocation8], 4
      %s68 = int_to_ptr.vmem [resolvable:$true] %s67
      %70 = dma.hbm_to_vmem [thread:$0]  %s3, 128, %s68, [#allocation9]
    $region17: #{tpu_custom_call.1} parent=1 // pred_fallthru
      _
    // Predicated region
    $region18: #{tpu_custom_call.1} parent=1 // pred_check
      _
    $region19: #{tpu_custom_call.1} parent=1 // pred_check_branch
      %72 = sbr.rel (0) target = $region21
    $region20: #{tpu_custom_call.1} parent=1 // pred_region
      %s74 = ssub.s32 256, 256
      %75 = vsyncadd [#allocation9], %s74
      %s77 = sshll.u32 [#allocation10], 4
      %s78 = int_to_ptr.vmem [resolvable:$true] %s77
      %80 = dma.hbm_to_vmem [thread:$0]  %s4, 256, %s78, [#allocation9]
    $region21: #{tpu_custom_call.1} parent=1 // pred_fallthru
      _
    // Predicated region
    $region22: #{tpu_custom_call.1} parent=1 // pred_check
      _
    $region23: #{tpu_custom_call.1} parent=1 // pred_check_branch
      %82 = sbr.rel (0) target = $region25
    $region24: #{tpu_custom_call.1} parent=1 // pred_region
      %s84 = ssub.s32 128, 128
      %85 = vsyncadd [#allocation12], %s84
      %s87 = sshll.u32 [#allocation11], 4
      %s88 = int_to_ptr.vmem [resolvable:$true] %s87
      %90 = dma.hbm_to_vmem [thread:$0]  %s5, 128, %s88, [#allocation12]
    $region25: #{tpu_custom_call.1} parent=1 // pred_fallthru
      _
    // Predicated region
    $region26: #{tpu_custom_call.1} parent=1 // pred_check
      _
    $region27: #{tpu_custom_call.1} parent=1 // pred_check_branch
      %92 = sbr.rel (0) target = $region29
    $region28: #{tpu_custom_call.1} parent=1 // pred_region
      %s94 = ssub.s32 256, 256
      %95 = vsyncadd [#allocation12], %s94
      %s97 = sshll.u32 [#allocation13], 4
      %s98 = int_to_ptr.vmem [resolvable:$true] %s97
      %100 = dma.hbm_to_vmem [thread:$0]  %s6, 256, %s98, [#allocation12]
    $region29: #{tpu_custom_call.1} parent=1 // pred_fallthru
      _
    // Predicated region
    $region30: #{tpu_custom_call.1} parent=1 // pred_check
      _
    $region31: #{tpu_custom_call.1} parent=1 // pred_check_branch
      %102 = sbr.rel (0) target = $region33
    $region32: #{tpu_custom_call.1} parent=1 // pred_region
      %s104 = ssub.s32 128, 128
      %105 = vsyncadd [#allocation15], %s104
      %s107 = sshll.u32 [#allocation14], 4
      %s108 = int_to_ptr.vmem [resolvable:$true] %s107
      %110 = dma.hbm_to_vmem [thread:$0]  %s7, 128, %s108, [#allocation15]
    $region33: #{tpu_custom_call.1} parent=1 // pred_fallthru
      _
    // Predicated region
    $region34: #{tpu_custom_call.1} parent=1 // pred_check
      _
    $region35: #{tpu_custom_call.1} parent=1 // pred_check_branch
      %112 = sbr.rel (0) target = $region37
    $region36: #{tpu_custom_call.1} parent=1 // pred_region
      %s114 = ssub.s32 256, 256
      %115 = vsyncadd [#allocation15], %s114
      %s117 = sshll.u32 [#allocation16], 4
      %s118 = int_to_ptr.vmem [resolvable:$true] %s117
      %120 = dma.hbm_to_vmem [thread:$0]  %s8, 256, %s118, [#allocation15]
    $region37: #{tpu_custom_call.1} parent=1 // pred_fallthru
      _
    // Predicated region
    $region38: #{tpu_custom_call.1} parent=1 // pred_check
      _
    $region39: #{tpu_custom_call.1} parent=1 // pred_check_branch
      %122 = sbr.rel (0) target = $region41
    $region40: #{tpu_custom_call.1} parent=1 // pred_region
      %s124 = ssub.s32 128, 128
      %125 = vsyncadd [#allocation18], %s124
      %s127 = sshll.u32 [#allocation17], 4
      %s128 = int_to_ptr.vmem [resolvable:$true] %s127
      %130 = dma.hbm_to_vmem [thread:$0]  %s9, 128, %s128, [#allocation18]
    $region41: #{tpu_custom_call.1} parent=1 // pred_fallthru
      _
    // Predicated region
    $region42: #{tpu_custom_call.1} parent=1 // pred_check
      _
    $region43: #{tpu_custom_call.1} parent=1 // pred_check_branch
      %132 = sbr.rel (0) target = $region45
    $region44: #{tpu_custom_call.1} parent=1 // pred_region
      %s134 = ssub.s32 256, 256
      %135 = vsyncadd [#allocation18], %s134
      %s137 = sshll.u32 [#allocation19], 4
      %s138 = int_to_ptr.vmem [resolvable:$true] %s137
      %140 = dma.hbm_to_vmem [thread:$0]  %s10, 256, %s138, [#allocation18]
    $region45: #{tpu_custom_call.1} parent=1 // pred_fallthru
      _
    // Predicated region
    $region46: #{tpu_custom_call.1} parent=1 // pred_check
      _
    $region47: #{tpu_custom_call.1} parent=1 // pred_check_branch
      %142 = sbr.rel (0) target = $region49
    $region48: #{tpu_custom_call.1} parent=1 // pred_region
      %s144 = ssub.s32 256, 256
      %145 = vsyncadd [#allocation21], %s144
      %s146 = sshll.u32 [#allocation20], 4
      %s147 = int_to_ptr.vmem [resolvable:$true] %s146
      %152 = dma.hbm_to_vmem [thread:$0]  %s11, 256, %s147, [#allocation21], 128, 128, 8
    $region49: #{tpu_custom_call.1} parent=1 // pred_fallthru
      _
    // Predicated region
    $region50: #{tpu_custom_call.1} parent=1 // pred_check
      _
    $region51: #{tpu_custom_call.1} parent=1 // pred_check_branch
      %154 = sbr.rel (0) target = $region53
    $region52: #{tpu_custom_call.1} parent=1 // pred_region
      _
    $region53: #{tpu_custom_call.1} parent=1 // pred_fallthru
      _
    // Predicated region
    $region54: #{tpu_custom_call.1} parent=1 // pred_check
      _
    $region55: #{tpu_custom_call.1} parent=1 // pred_check_branch
      %156 = sbr.rel (0) target = $region57
    $region56: #{tpu_custom_call.1} parent=1 // pred_region
      %s158 = ssub.s32 256, 256
      %159 = vsyncadd [#allocation21], %s158
      %s160 = sshll.u32 [#allocation22], 4
      %s161 = int_to_ptr.vmem [resolvable:$true] %s160
      %166 = dma.hbm_to_vmem [thread:$0]  %s13, 256, %s161, [#allocation21], 128, 128, 8
    $region57: #{tpu_custom_call.1} parent=1 // pred_fallthru
      _
    // Predicated region
    $region58: #{tpu_custom_call.1} parent=1 // pred_check
      _
    $region59: #{tpu_custom_call.1} parent=1 // pred_check_branch
      %168 = sbr.rel (0) target = $region61
    $region60: #{tpu_custom_call.1} parent=1 // pred_region
      _
    $region61: #{tpu_custom_call.1} parent=1 // pred_fallthru
      _
    // Predicated region
    $region62: #{tpu_custom_call.1} parent=1 // pred_check
      _
    $region63: #{tpu_custom_call.1} parent=1 // pred_check_branch
      %170 = sbr.rel (0) target = $region65
    $region64: #{tpu_custom_call.1} parent=1 // pred_region
      _
    $region65: #{tpu_custom_call.1} parent=1 // pred_fallthru
      _
    // Predicated region
    $region66: #{tpu_custom_call.1} parent=1 // pred_check
      _
    $region67: #{tpu_custom_call.1} parent=1 // pred_check_branch
      %172 = sbr.rel (0) target = $region69
    $region68: #{tpu_custom_call.1} parent=1 // pred_region
      %s174 = ssub.s32 512, 512
      %175 = vsyncadd [#allocation24], %s174
      %s176 = sshll.u32 [#allocation23], 4
      %s177 = int_to_ptr.vmem [resolvable:$true] %s176
      %182 = dma.hbm_to_vmem [thread:$0]  %s16, 512, %s177, [#allocation24], 256, 256, 16
    $region69: #{tpu_custom_call.1} parent=1 // pred_fallthru
      _
    // Predicated region
    $region70: #{tpu_custom_call.1} parent=1 // pred_check
      _
    $region71: #{tpu_custom_call.1} parent=1 // pred_check_branch
      %184 = sbr.rel (0) target = $region73
    $region72: #{tpu_custom_call.1} parent=1 // pred_region
      %185 = dma.done [#allocation3], 256
    $region73: #{tpu_custom_call.1} parent=1 // pred_fallthru
      _
    // Predicated region
    $region74: #{tpu_custom_call.1} parent=1 // pred_check
      _
    $region75: #{tpu_custom_call.1} parent=1 // pred_check_branch
      %187 = sbr.rel (0) target = $region77
    $region76: #{tpu_custom_call.1} parent=1 // pred_region
      %188 = dma.done [#allocation6], 128
    $region77: #{tpu_custom_call.1} parent=1 // pred_fallthru
      _
    // Predicated region
    $region78: #{tpu_custom_call.1} parent=1 // pred_check
      _
    $region79: #{tpu_custom_call.1} parent=1 // pred_check_branch
      %190 = sbr.rel (0) target = $region81
    $region80: #{tpu_custom_call.1} parent=1 // pred_region
      %191 = dma.done [#allocation6], 256
    $region81: #{tpu_custom_call.1} parent=1 // pred_fallthru
      _
    // Predicated region
    $region82: #{tpu_custom_call.1} parent=1 // pred_check
      _
    $region83: #{tpu_custom_call.1} parent=1 // pred_check_branch
      %193 = sbr.rel (0) target = $region85
    $region84: #{tpu_custom_call.1} parent=1 // pred_region
      %194 = dma.done [#allocation9], 128
    $region85: #{tpu_custom_call.1} parent=1 // pred_fallthru
      _
    // Predicated region
    $region86: #{tpu_custom_call.1} parent=1 // pred_check
      _
    $region87: #{tpu_custom_call.1} parent=1 // pred_check_branch
      %196 = sbr.rel (0) target = $region89
    $region88: #{tpu_custom_call.1} parent=1 // pred_region
      %197 = dma.done [#allocation9], 256
    $region89: #{tpu_custom_call.1} parent=1 // pred_fallthru
      _
    // Predicated region
    $region90: #{tpu_custom_call.1} parent=1 // pred_check
      _
    $region91: #{tpu_custom_call.1} parent=1 // pred_check_branch
      %199 = sbr.rel (0) target = $region93
    $region92: #{tpu_custom_call.1} parent=1 // pred_region
      %200 = dma.done [#allocation12], 128
    $region93: #{tpu_custom_call.1} parent=1 // pred_fallthru
      _
    // Predicated region
    $region94: #{tpu_custom_call.1} parent=1 // pred_check
      _
    $region95: #{tpu_custom_call.1} parent=1 // pred_check_branch
      %202 = sbr.rel (0) target = $region97
    $region96: #{tpu_custom_call.1} parent=1 // pred_region
      %203 = dma.done [#allocation12], 256
    $region97: #{tpu_custom_call.1} parent=1 // pred_fallthru
      _
    // Predicated region
    $region98: #{tpu_custom_call.1} parent=1 // pred_check
      _
    $region99: #{tpu_custom_call.1} parent=1 // pred_check_branch
      %205 = sbr.rel (0) target = $region101
    $region100: #{tpu_custom_call.1} parent=1 // pred_region
      %206 = dma.done [#allocation15], 128
    $region101: #{tpu_custom_call.1} parent=1 // pred_fallthru
      _
    // Predicated region
    $region102: #{tpu_custom_call.1} parent=1 // pred_check
      _
    $region103: #{tpu_custom_call.1} parent=1 // pred_check_branch
      %208 = sbr.rel (0) target = $region105
    $region104: #{tpu_custom_call.1} parent=1 // pred_region
      %209 = dma.done [#allocation15], 256
    $region105: #{tpu_custom_call.1} parent=1 // pred_fallthru
      _
    // Predicated region
    $region106: #{tpu_custom_call.1} parent=1 // pred_check
      _
    $region107: #{tpu_custom_call.1} parent=1 // pred_check_branch
      %211 = sbr.rel (0) target = $region109
    $region108: #{tpu_custom_call.1} parent=1 // pred_region
      %212 = dma.done [#allocation18], 128
    $region109: #{tpu_custom_call.1} parent=1 // pred_fallthru
      _
    // Predicated region
    $region110: #{tpu_custom_call.1} parent=1 // pred_check
      _
    $region111: #{tpu_custom_call.1} parent=1 // pred_check_branch
      %214 = sbr.rel (0) target = $region113
    $region112: #{tpu_custom_call.1} parent=1 // pred_region
      %215 = dma.done [#allocation18], 256
    $region113: #{tpu_custom_call.1} parent=1 // pred_fallthru
      _
    // Predicated region
    $region114: #{tpu_custom_call.1} parent=1 // pred_check
      _
    $region115: #{tpu_custom_call.1} parent=1 // pred_check_branch
      %217 = sbr.rel (0) target = $region117
    $region116: #{tpu_custom_call.1} parent=1 // pred_region
      %218 = dma.done [#allocation21], 256
    $region117: #{tpu_custom_call.1} parent=1 // pred_fallthru
      _
    // Predicated region
    $region118: #{tpu_custom_call.1} parent=1 // pred_check
      _
    $region119: #{tpu_custom_call.1} parent=1 // pred_check_branch
      %220 = sbr.rel (0) target = $region121
    $region120: #{tpu_custom_call.1} parent=1 // pred_region
      %221 = dma.done [#allocation21], 256
    $region121: #{tpu_custom_call.1} parent=1 // pred_fallthru
      _
    // Predicated region
    $region122: #{tpu_custom_call.1} parent=1 // pred_check
      _
    $region123: #{tpu_custom_call.1} parent=1 // pred_check_branch
      %223 = sbr.rel (0) target = $region125
    $region124: #{tpu_custom_call.1} parent=1 // pred_region
      %224 = dma.done [#allocation24], 512
    $region125: #{tpu_custom_call.1} parent=1 // pred_fallthru
      _
    %v225 = vlaneseq
    %v226 = vand.u32 %v225, 127
    %v227 = vadd.s32 %v226, 128
    %v228 = vand.u32 %v226, 127
    %v229 = vand.u32 %v227, 127
    %v230 = vld [vmem:[#allocation2] sm:$0xff]
    %v231 = vld [vmem:[#allocation2 + $0x8] sm:$0xff]
    %v232 = vld [vmem:[#allocation11] sm:$0xff]
    %v233 = vld [vmem:[#allocation13] sm:$0xff]
    %v234 = vld [vmem:[#allocation13 + $0x8] sm:$0xff]
    %vm235 = vcmask 64512
    %v237 = vsel %vm235, %v232, 0
    %239 = vmatprep.subr.mxu0 %v231
    %240 = vmatpush1.msra.mxu0 %v230
    %241 = vmatprep.subr.mxu0 0.0
    %242 = vmatpush1.msra.mxu0 0.0
    %243 = vmatprep.subr.mxu0 0.0
    %244 = vmatpush1.msra.mxu0 0.0
    %245 = vmatprep.subr.mxu0 0.0
    %246 = vmatpush1.msra.mxu0 0.0
    %247 = vmatprep.subr.mxu0 0.0
    %248 = vmatpush1.msra.mxu0 0.0
    %249 = vmatprep.subr.mxu0 0.0
    %250 = vmatpush1.msra.mxu0 0.0
    %251 = vmatprep.subr.mxu0 0.0
    %252 = vmatpush1.msra.mxu0 0.0
    %253 = vmatprep.subr.mxu0 0.0
    %254 = vmatpush1.msra.mxu0 0.0
    %255 = vmatprep.subr.mxu0 0.0
    %256 = vmatpush1.msra.mxu0 0.0
    %257 = vmatprep.subr.mxu0 0.0
    %258 = vmatpush1.msra.mxu0 0.0
    %259 = vmatprep.subr.mxu0 0.0
    %260 = vmatpush1.msra.mxu0 0.0
    %261 = vmatprep.subr.mxu0 0.0
    %262 = vmatpush1.msra.mxu0 0.0
    %263 = vmatprep.subr.mxu0 0.0
    %264 = vmatpush1.msra.mxu0 0.0
    %265 = vmatprep.subr.mxu0 0.0
    %266 = vmatpush1.msra.mxu0 0.0
    %267 = vmatprep.subr.mxu0 0.0
    %268 = vmatpush1.msra.mxu0 0.0
    %269 = vmatprep.subr.mxu0 0.0
    %270 = vmatpush1.msra.mxu0 0.0
    %271 = vmatprep.subr.mxu0 0.0
    %272 = vmatpush1.msra.mxu0 0.0
    %273 = vmatprep.subr.mxu0 0.0
    %274 = vmatpush1.msra.mxu0 0.0
    %275 = vmatprep.subr.mxu0 0.0
    %276 = vmatpush1.msra.mxu0 0.0
    %277 = vmatprep.subr.mxu0 0.0
    %278 = vmatpush1.msra.mxu0 0.0
    %279 = vmatprep.subr.mxu0 0.0
    %280 = vmatpush1.msra.mxu0 0.0
    %281 = vmatprep.subr.mxu0 0.0
    %282 = vmatpush1.msra.mxu0 0.0
    %283 = vmatprep.subr.mxu0 0.0
    %284 = vmatpush1.msra.mxu0 0.0
    %285 = vmatprep.subr.mxu0 0.0
    %286 = vmatpush1.msra.mxu0 0.0
    %287 = vmatprep.subr.mxu0 0.0
    %288 = vmatpush1.msra.mxu0 0.0
    %289 = vmatprep.subr.mxu0 0.0
    %290 = vmatpush1.msra.mxu0 0.0
    %291 = vmatprep.subr.mxu0 0.0
    %292 = vmatpush1.msra.mxu0 0.0
    %293 = vmatprep.subr.mxu0 0.0
    %294 = vmatpush1.msra.mxu0 0.0
    %295 = vmatprep.subr.mxu0 0.0
    %296 = vmatpush1.msra.mxu0 0.0
    %297 = vmatprep.subr.mxu0 0.0
    %298 = vmatpush1.msra.mxu0 0.0
    %299 = vmatprep.subr.mxu0 0.0
    %300 = vmatpush1.msra.mxu0 0.0
    %301 = vmatprep.subr.mxu0 0.0
    %302 = vmatpush1.msra.mxu0 0.0
    %303 = vmatprep.mubr.f32.mxu0 0.0
    %304 = vmatmul.mubr.f32.gmra.mrb[0].mxu0 %v237
    %v305 = vpop.f32.mrb[0].mxu0
    %v306 = vadd.f32 %v233, %v305
    %v307 = vpop.f32.mrb[0].mxu0
    %v308 = vadd.f32 %v234, %v307
    %309 = vdwg.mxu0
    %310 = vrot.lane.b32.xlu0 %v230, 2
    %v311 = vpop.permute.xlu0 %310
    %312 = vrot.lane.b32.xlu0 %v231, 2
    %v313 = vpop.permute.xlu0 %312
    %vm314 = vcmp.lt.s32.totalorder %v226, 2
    %v315 = vsel %vm314, %v311, %v313
    %v316 = vsel %vm314, %v313, %v311
    %vm317 = vcmp.lt.s32.totalorder %v228, 2
    %vm318 = vcmp.lt.s32.totalorder %v229, 2
    %v319 = vsel %vm317, 1, 0
    %v320 = vsel %vm318, 1, 0
    %vm321 = vcmp.eq.s32.totalorder %v319, 1
    %vm322 = vcmp.eq.s32.totalorder %v320, 1
    %v323 = vsel %vm321, 0.0, %v316
    %v324 = vsel %vm322, 0.0, %v315
    %325 = vrot.lane.b32.xlu0 %v230, 1
    %v326 = vpop.permute.xlu0 %325
    %327 = vrot.lane.b32.xlu0 %v231, 1
    %v328 = vpop.permute.xlu0 %327
    %vm329 = vcmp.lt.s32.totalorder %v226, 1
    %v330 = vsel %vm329, %v326, %v328
    %v331 = vsel %vm329, %v328, %v326
    %vm332 = vcmp.lt.s32.totalorder %v228, 1
    %vm333 = vcmp.lt.s32.totalorder %v229, 1
    %v334 = vsel %vm332, 1, 0
    %v335 = vsel %vm333, 1, 0
    %vm336 = vcmp.eq.s32.totalorder %v334, 1
    %vm337 = vcmp.eq.s32.totalorder %v335, 1
    %v338 = vsel %vm336, 0.0, %v331
    %v339 = vsel %vm337, 0.0, %v330
    %v340 = vld [vmem:[#allocation5] sm:$0xff]
    %v341 = vld [vmem:[#allocation7] sm:$0xff]
    %v342 = vld [vmem:[#allocation7 + $0x8] sm:$0xff]
    %vm343 = vcmask 195584
    %v345 = vsel %vm343, %v340, 0
    %347 = vmatprep.subr.mxu0 %v324
    %348 = vmatpush1.msra.mxu0 %v323
    %349 = vmatprep.subr.mxu0 %v339
    %350 = vmatpush1.msra.mxu0 %v338
    %351 = vmatprep.subr.mxu0 %v231
    %352 = vmatpush1.msra.mxu0 %v230
    %353 = vmatprep.subr.mxu0 0.0
    %354 = vmatpush1.msra.mxu0 0.0
    %355 = vmatprep.subr.mxu0 0.0
    %356 = vmatpush1.msra.mxu0 0.0
    %357 = vmatprep.subr.mxu0 0.0
    %358 = vmatpush1.msra.mxu0 0.0
    %359 = vmatprep.subr.mxu0 0.0
    %360 = vmatpush1.msra.mxu0 0.0
    %361 = vmatprep.subr.mxu0 0.0
    %362 = vmatpush1.msra.mxu0 0.0
    %363 = vmatprep.subr.mxu0 0.0
    %364 = vmatpush1.msra.mxu0 0.0
    %365 = vmatprep.subr.mxu0 0.0
    %366 = vmatpush1.msra.mxu0 0.0
    %367 = vmatprep.subr.mxu0 0.0
    %368 = vmatpush1.msra.mxu0 0.0
    %369 = vmatprep.subr.mxu0 0.0
    %370 = vmatpush1.msra.mxu0 0.0
    %371 = vmatprep.subr.mxu0 0.0
    %372 = vmatpush1.msra.mxu0 0.0
    %373 = vmatprep.subr.mxu0 0.0
    %374 = vmatpush1.msra.mxu0 0.0
    %375 = vmatprep.subr.mxu0 0.0
    %376 = vmatpush1.msra.mxu0 0.0
    %377 = vmatprep.subr.mxu0 0.0
    %378 = vmatpush1.msra.mxu0 0.0
    %379 = vmatprep.subr.mxu0 0.0
    %380 = vmatpush1.msra.mxu0 0.0
    %381 = vmatprep.subr.mxu0 0.0
    %382 = vmatpush1.msra.mxu0 0.0
    %383 = vmatprep.subr.mxu0 0.0
    %384 = vmatpush1.msra.mxu0 0.0
    %385 = vmatprep.subr.mxu0 0.0
    %386 = vmatpush1.msra.mxu0 0.0
    %387 = vmatprep.subr.mxu0 0.0
    %388 = vmatpush1.msra.mxu0 0.0
    %389 = vmatprep.subr.mxu0 0.0
    %390 = vmatpush1.msra.mxu0 0.0
    %391 = vmatprep.subr.mxu0 0.0
    %392 = vmatpush1.msra.mxu0 0.0
    %393 = vmatprep.subr.mxu0 0.0
    %394 = vmatpush1.msra.mxu0 0.0
    %395 = vmatprep.subr.mxu0 0.0
    %396 = vmatpush1.msra.mxu0 0.0
    %397 = vmatprep.subr.mxu0 0.0
    %398 = vmatpush1.msra.mxu0 0.0
    %399 = vmatprep.subr.mxu0 0.0
    %400 = vmatpush1.msra.mxu0 0.0
    %401 = vmatprep.subr.mxu0 0.0
    %402 = vmatpush1.msra.mxu0 0.0
    %403 = vmatprep.subr.mxu0 0.0
    %404 = vmatpush1.msra.mxu0 0.0
    %405 = vmatprep.subr.mxu0 0.0
    %406 = vmatpush1.msra.mxu0 0.0
    %407 = vmatprep.subr.mxu0 0.0
    %408 = vmatpush1.msra.mxu0 0.0
    %409 = vmatprep.subr.mxu0 0.0
    %410 = vmatpush1.msra.mxu0 0.0
    %411 = vmatprep.mubr.f32.mxu0 0.0
    %412 = vmatmul.mubr.f32.gmra.mrb[0].mxu0 %v345
    %v413 = vpop.f32.mrb[0].mxu0
    %v414 = vadd.f32 %v341, %v413
    %v415 = vpop.f32.mrb[0].mxu0
    %v416 = vadd.f32 %v342, %v415
    %417 = vdwg.mxu0
    %v418 = vmax.f32 %v414, 0.0
    %v419 = vmax.f32 %v416, 0.0
    %420 = vrot.lane.b32.xlu0 %v418, 2
    %v421 = vpop.permute.xlu0 %420
    %422 = vrot.lane.b32.xlu0 %v419, 2
    %v423 = vpop.permute.xlu0 %422
    %v424 = vsel %vm314, %v421, %v423
    %v425 = vsel %vm314, %v423, %v421
    %v426 = vsel %vm321, 0.0, %v425
    %v427 = vsel %vm322, 0.0, %v424
    %428 = vrot.lane.b32.xlu0 %v418, 1
    %v429 = vpop.permute.xlu0 %428
    %430 = vrot.lane.b32.xlu0 %v419, 1
    %v431 = vpop.permute.xlu0 %430
    %v432 = vsel %vm329, %v429, %v431
    %v433 = vsel %vm329, %v431, %v429
    %v434 = vsel %vm336, 0.0, %v433
    %v435 = vsel %vm337, 0.0, %v432
    %v436 = vld [vmem:[#allocation8] sm:$0xff]
    %v437 = vld [vmem:[#allocation10] sm:$0xff]
    %v438 = vld [vmem:[#allocation10 + $0x8] sm:$0xff]
    %v440 = vsel %vm343, %v436, 0
    %442 = vmatprep.subr.mxu0 %v427
    %443 = vmatpush1.msra.mxu0 %v426
    %444 = vmatprep.subr.mxu0 %v435
    %445 = vmatpush1.msra.mxu0 %v434
    %446 = vmatprep.subr.mxu0 %v419
    %447 = vmatpush1.msra.mxu0 %v418
    %448 = vmatprep.subr.mxu0 0.0
    %449 = vmatpush1.msra.mxu0 0.0
    %450 = vmatprep.subr.mxu0 0.0
    %451 = vmatpush1.msra.mxu0 0.0
    %452 = vmatprep.subr.mxu0 0.0
    %453 = vmatpush1.msra.mxu0 0.0
    %454 = vmatprep.subr.mxu0 0.0
    %455 = vmatpush1.msra.mxu0 0.0
    %456 = vmatprep.subr.mxu0 0.0
    %457 = vmatpush1.msra.mxu0 0.0
    %458 = vmatprep.subr.mxu0 0.0
    %459 = vmatpush1.msra.mxu0 0.0
    %460 = vmatprep.subr.mxu0 0.0
    %461 = vmatpush1.msra.mxu0 0.0
    %462 = vmatprep.subr.mxu0 0.0
    %463 = vmatpush1.msra.mxu0 0.0
    %464 = vmatprep.subr.mxu0 0.0
    %465 = vmatpush1.msra.mxu0 0.0
    %466 = vmatprep.subr.mxu0 0.0
    %467 = vmatpush1.msra.mxu0 0.0
    %468 = vmatprep.subr.mxu0 0.0
    %469 = vmatpush1.msra.mxu0 0.0
    %470 = vmatprep.subr.mxu0 0.0
    %471 = vmatpush1.msra.mxu0 0.0
    %472 = vmatprep.subr.mxu0 0.0
    %473 = vmatpush1.msra.mxu0 0.0
    %474 = vmatprep.subr.mxu0 0.0
    %475 = vmatpush1.msra.mxu0 0.0
    %476 = vmatprep.subr.mxu0 0.0
    %477 = vmatpush1.msra.mxu0 0.0
    %478 = vmatprep.subr.mxu0 0.0
    %479 = vmatpush1.msra.mxu0 0.0
    %480 = vmatprep.subr.mxu0 0.0
    %481 = vmatpush1.msra.mxu0 0.0
    %482 = vmatprep.subr.mxu0 0.0
    %483 = vmatpush1.msra.mxu0 0.0
    %484 = vmatprep.subr.mxu0 0.0
    %485 = vmatpush1.msra.mxu0 0.0
    %486 = vmatprep.subr.mxu0 0.0
    %487 = vmatpush1.msra.mxu0 0.0
    %488 = vmatprep.subr.mxu0 0.0
    %489 = vmatpush1.msra.mxu0 0.0
    %490 = vmatprep.subr.mxu0 0.0
    %491 = vmatpush1.msra.mxu0 0.0
    %492 = vmatprep.subr.mxu0 0.0
    %493 = vmatpush1.msra.mxu0 0.0
    %494 = vmatprep.subr.mxu0 0.0
    %495 = vmatpush1.msra.mxu0 0.0
    %496 = vmatprep.subr.mxu0 0.0
    %497 = vmatpush1.msra.mxu0 0.0
    %498 = vmatprep.subr.mxu0 0.0
    %499 = vmatpush1.msra.mxu0 0.0
    %500 = vmatprep.subr.mxu0 0.0
    %501 = vmatpush1.msra.mxu0 0.0
    %502 = vmatprep.subr.mxu0 0.0
    %503 = vmatpush1.msra.mxu0 0.0
    %504 = vmatprep.subr.mxu0 0.0
    %505 = vmatpush1.msra.mxu0 0.0
    %506 = vmatprep.mubr.f32.mxu0 0.0
    %507 = vmatmul.mubr.f32.gmra.mrb[0].mxu0 %v440
    %v508 = vpop.f32.mrb[0].mxu0
    %v509 = vadd.f32 %v437, %v508
    %v510 = vpop.f32.mrb[0].mxu0
    %v511 = vadd.f32 %v438, %v510
    %512 = vdwg.mxu0
    %v513 = vmax.f32 %v509, 0.0
    %v514 = vmax.f32 %v511, 0.0
    %v515 = vadd.f32 %v513, %v306
    %v516 = vadd.f32 %v514, %v308
    %517 = vrot.lane.b32.xlu0 %v515, 4
    %v518 = vpop.permute.xlu0 %517
    %519 = vrot.lane.b32.xlu0 %v516, 4
    %v520 = vpop.permute.xlu0 %519
    %vm521 = vcmp.lt.s32.totalorder %v226, 4
    %v522 = vsel %vm521, %v518, %v520
    %v523 = vsel %vm521, %v520, %v518
    %vm524 = vcmp.lt.s32.totalorder %v228, 4
    %vm525 = vcmp.lt.s32.totalorder %v229, 4
    %v526 = vsel %vm524, 1, 0
    %v527 = vsel %vm525, 1, 0
    %vm528 = vcmp.eq.s32.totalorder %v526, 1
    %vm529 = vcmp.eq.s32.totalorder %v527, 1
    %v530 = vsel %vm528, 0.0, %v523
    %v531 = vsel %vm529, 0.0, %v522
    %532 = vrot.lane.b32.xlu0 %v515, 2
    %v533 = vpop.permute.xlu0 %532
    %534 = vrot.lane.b32.xlu0 %v516, 2
    %v535 = vpop.permute.xlu0 %534
    %v536 = vsel %vm314, %v533, %v535
    %v537 = vsel %vm314, %v535, %v533
    %v538 = vsel %vm321, 0.0, %v537
    %v539 = vsel %vm322, 0.0, %v536
    %v540 = vld [vmem:[#allocation14] sm:$0xff]
    %v541 = vld [vmem:[#allocation16] sm:$0xff]
    %v542 = vld [vmem:[#allocation16 + $0x8] sm:$0xff]
    %v544 = vsel %vm343, %v540, 0
    %546 = vmatprep.subr.mxu0 %v531
    %547 = vmatpush1.msra.mxu0 %v530
    %548 = vmatprep.subr.mxu0 %v539
    %549 = vmatpush1.msra.mxu0 %v538
    %550 = vmatprep.subr.mxu0 %v516
    %551 = vmatpush1.msra.mxu0 %v515
    %552 = vmatprep.subr.mxu0 0.0
    %553 = vmatpush1.msra.mxu0 0.0
    %554 = vmatprep.subr.mxu0 0.0
    %555 = vmatpush1.msra.mxu0 0.0
    %556 = vmatprep.subr.mxu0 0.0
    %557 = vmatpush1.msra.mxu0 0.0
    %558 = vmatprep.subr.mxu0 0.0
    %559 = vmatpush1.msra.mxu0 0.0
    %560 = vmatprep.subr.mxu0 0.0
    %561 = vmatpush1.msra.mxu0 0.0
    %562 = vmatprep.subr.mxu0 0.0
    %563 = vmatpush1.msra.mxu0 0.0
    %564 = vmatprep.subr.mxu0 0.0
    %565 = vmatpush1.msra.mxu0 0.0
    %566 = vmatprep.subr.mxu0 0.0
    %567 = vmatpush1.msra.mxu0 0.0
    %568 = vmatprep.subr.mxu0 0.0
    %569 = vmatpush1.msra.mxu0 0.0
    %570 = vmatprep.subr.mxu0 0.0
    %571 = vmatpush1.msra.mxu0 0.0
    %572 = vmatprep.subr.mxu0 0.0
    %573 = vmatpush1.msra.mxu0 0.0
    %574 = vmatprep.subr.mxu0 0.0
    %575 = vmatpush1.msra.mxu0 0.0
    %576 = vmatprep.subr.mxu0 0.0
    %577 = vmatpush1.msra.mxu0 0.0
    %578 = vmatprep.subr.mxu0 0.0
    %579 = vmatpush1.msra.mxu0 0.0
    %580 = vmatprep.subr.mxu0 0.0
    %581 = vmatpush1.msra.mxu0 0.0
    %582 = vmatprep.subr.mxu0 0.0
    %583 = vmatpush1.msra.mxu0 0.0
    %584 = vmatprep.subr.mxu0 0.0
    %585 = vmatpush1.msra.mxu0 0.0
    %586 = vmatprep.subr.mxu0 0.0
    %587 = vmatpush1.msra.mxu0 0.0
    %588 = vmatprep.subr.mxu0 0.0
    %589 = vmatpush1.msra.mxu0 0.0
    %590 = vmatprep.subr.mxu0 0.0
    %591 = vmatpush1.msra.mxu0 0.0
    %592 = vmatprep.subr.mxu0 0.0
    %593 = vmatpush1.msra.mxu0 0.0
    %594 = vmatprep.subr.mxu0 0.0
    %595 = vmatpush1.msra.mxu0 0.0
    %596 = vmatprep.subr.mxu0 0.0
    %597 = vmatpush1.msra.mxu0 0.0
    %598 = vmatprep.subr.mxu0 0.0
    %599 = vmatpush1.msra.mxu0 0.0
    %600 = vmatprep.subr.mxu0 0.0
    %601 = vmatpush1.msra.mxu0 0.0
    %602 = vmatprep.subr.mxu0 0.0
    %603 = vmatpush1.msra.mxu0 0.0
    %604 = vmatprep.subr.mxu0 0.0
    %605 = vmatpush1.msra.mxu0 0.0
    %606 = vmatprep.subr.mxu0 0.0
    %607 = vmatpush1.msra.mxu0 0.0
    %608 = vmatprep.subr.mxu0 0.0
    %609 = vmatpush1.msra.mxu0 0.0
    %610 = vmatprep.mubr.f32.mxu0 0.0
    %611 = vmatmul.mubr.f32.gmra.mrb[0].mxu0 %v544
    %v612 = vpop.f32.mrb[0].mxu0
    %v613 = vadd.f32 %v541, %v612
    %v614 = vpop.f32.mrb[0].mxu0
    %v615 = vadd.f32 %v542, %v614
    %616 = vdwg.mxu0
    %v617 = vmax.f32 %v613, 0.0
    %v618 = vmax.f32 %v615, 0.0
    %619 = vrot.lane.b32.xlu0 %v617, 4
    %v620 = vpop.permute.xlu0 %619
    %621 = vrot.lane.b32.xlu0 %v618, 4
    %v622 = vpop.permute.xlu0 %621
    %v623 = vsel %vm521, %v620, %v622
    %v624 = vsel %vm521, %v622, %v620
    %v625 = vsel %vm528, 0.0, %v624
    %v626 = vsel %vm529, 0.0, %v623
    %627 = vrot.lane.b32.xlu0 %v617, 2
    %v628 = vpop.permute.xlu0 %627
    %629 = vrot.lane.b32.xlu0 %v618, 2
    %v630 = vpop.permute.xlu0 %629
    %v631 = vsel %vm314, %v628, %v630
    %v632 = vsel %vm314, %v630, %v628
    %v633 = vsel %vm321, 0.0, %v632
    %v634 = vsel %vm322, 0.0, %v631
    %v635 = vld [vmem:[#allocation17] sm:$0xff]
    %v636 = vld [vmem:[#allocation19] sm:$0xff]
    %v637 = vld [vmem:[#allocation19 + $0x8] sm:$0xff]
    %v639 = vsel %vm343, %v635, 0
    %641 = vmatprep.subr.mxu0 %v626
    %642 = vmatpush1.msra.mxu0 %v625
    %643 = vmatprep.subr.mxu0 %v634
    %644 = vmatpush1.msra.mxu0 %v633
    %645 = vmatprep.subr.mxu0 %v618
    %646 = vmatpush1.msra.mxu0 %v617
    %647 = vmatprep.subr.mxu0 0.0
    %648 = vmatpush1.msra.mxu0 0.0
    %649 = vmatprep.subr.mxu0 0.0
    %650 = vmatpush1.msra.mxu0 0.0
    %651 = vmatprep.subr.mxu0 0.0
    %652 = vmatpush1.msra.mxu0 0.0
    %653 = vmatprep.subr.mxu0 0.0
    %654 = vmatpush1.msra.mxu0 0.0
    %655 = vmatprep.subr.mxu0 0.0
    %656 = vmatpush1.msra.mxu0 0.0
    %657 = vmatprep.subr.mxu0 0.0
    %658 = vmatpush1.msra.mxu0 0.0
    %659 = vmatprep.subr.mxu0 0.0
    %660 = vmatpush1.msra.mxu0 0.0
    %661 = vmatprep.subr.mxu0 0.0
    %662 = vmatpush1.msra.mxu0 0.0
    %663 = vmatprep.subr.mxu0 0.0
    %664 = vmatpush1.msra.mxu0 0.0
    %665 = vmatprep.subr.mxu0 0.0
    %666 = vmatpush1.msra.mxu0 0.0
    %667 = vmatprep.subr.mxu0 0.0
    %668 = vmatpush1.msra.mxu0 0.0
    %669 = vmatprep.subr.mxu0 0.0
    %670 = vmatpush1.msra.mxu0 0.0
    %671 = vmatprep.subr.mxu0 0.0
    %672 = vmatpush1.msra.mxu0 0.0
    %673 = vmatprep.subr.mxu0 0.0
    %674 = vmatpush1.msra.mxu0 0.0
    %675 = vmatprep.subr.mxu0 0.0
    %676 = vmatpush1.msra.mxu0 0.0
    %677 = vmatprep.subr.mxu0 0.0
    %678 = vmatpush1.msra.mxu0 0.0
    %679 = vmatprep.subr.mxu0 0.0
    %680 = vmatpush1.msra.mxu0 0.0
    %681 = vmatprep.subr.mxu0 0.0
    %682 = vmatpush1.msra.mxu0 0.0
    %683 = vmatprep.subr.mxu0 0.0
    %684 = vmatpush1.msra.mxu0 0.0
    %685 = vmatprep.subr.mxu0 0.0
    %686 = vmatpush1.msra.mxu0 0.0
    %687 = vmatprep.subr.mxu0 0.0
    %688 = vmatpush1.msra.mxu0 0.0
    %689 = vmatprep.subr.mxu0 0.0
    %690 = vmatpush1.msra.mxu0 0.0
    %691 = vmatprep.subr.mxu0 0.0
    %692 = vmatpush1.msra.mxu0 0.0
    %693 = vmatprep.subr.mxu0 0.0
    %694 = vmatpush1.msra.mxu0 0.0
    %695 = vmatprep.subr.mxu0 0.0
    %696 = vmatpush1.msra.mxu0 0.0
    %697 = vmatprep.subr.mxu0 0.0
    %698 = vmatpush1.msra.mxu0 0.0
    %699 = vmatprep.subr.mxu0 0.0
    %700 = vmatpush1.msra.mxu0 0.0
    %701 = vmatprep.subr.mxu0 0.0
    %702 = vmatpush1.msra.mxu0 0.0
    %703 = vmatprep.subr.mxu0 0.0
    %704 = vmatpush1.msra.mxu0 0.0
    %705 = vmatprep.mubr.f32.mxu0 0.0
    %706 = vmatmul.mubr.f32.gmra.mrb[0].mxu0 %v639
    %v707 = vpop.f32.mrb[0].mxu0
    %v708 = vadd.f32 %v636, %v707
    %v709 = vpop.f32.mrb[0].mxu0
    %v710 = vadd.f32 %v637, %v709
    %711 = vdwg.mxu0
    %v712 = vmax.f32 %v708, 0.0
    %v713 = vmax.f32 %v710, 0.0
    %v714 = vadd.f32 %v712, %v515
    %v715 = vadd.f32 %v713, %v516
    %v716 = vld [vmem:[%s15] sm:$0xff]
    %v717 = vld [vmem:[%s15 + $0x8] sm:$0xff]
    %v718 = vld [vmem:[#allocation23] sm:$0xff]
    %v719 = vld [vmem:[#allocation23 + $0x8] sm:$0xff]
    %v720 = vld [vmem:[#allocation23 + $0x10] sm:$0xff]
    %v721 = vld [vmem:[#allocation23 + $0x18] sm:$0xff]
    %v723 = vsel %vm235, %v716, 0
    %v726 = vsel %vm235, %v717, 0
    %728 = vmatprep.subr.mxu0 %v715
    %729 = vmatpush1.msra.mxu0 %v714
    %730 = vmatprep.subr.mxu0 0.0
    %731 = vmatpush1.msra.mxu0 0.0
    %732 = vmatprep.subr.mxu0 0.0
    %733 = vmatpush1.msra.mxu0 0.0
    %734 = vmatprep.subr.mxu0 0.0
    %735 = vmatpush1.msra.mxu0 0.0
    %736 = vmatprep.subr.mxu0 0.0
    %737 = vmatpush1.msra.mxu0 0.0
    %738 = vmatprep.subr.mxu0 0.0
    %739 = vmatpush1.msra.mxu0 0.0
    %740 = vmatprep.subr.mxu0 0.0
    %741 = vmatpush1.msra.mxu0 0.0
    %742 = vmatprep.subr.mxu0 0.0
    %743 = vmatpush1.msra.mxu0 0.0
    %744 = vmatprep.subr.mxu0 0.0
    %745 = vmatpush1.msra.mxu0 0.0
    %746 = vmatprep.subr.mxu0 0.0
    %747 = vmatpush1.msra.mxu0 0.0
    %748 = vmatprep.subr.mxu0 0.0
    %749 = vmatpush1.msra.mxu0 0.0
    %750 = vmatprep.subr.mxu0 0.0
    %751 = vmatpush1.msra.mxu0 0.0
    %752 = vmatprep.subr.mxu0 0.0
    %753 = vmatpush1.msra.mxu0 0.0
    %754 = vmatprep.subr.mxu0 0.0
    %755 = vmatpush1.msra.mxu0 0.0
    %756 = vmatprep.subr.mxu0 0.0
    %757 = vmatpush1.msra.mxu0 0.0
    %758 = vmatprep.subr.mxu0 0.0
    %759 = vmatpush1.msra.mxu0 0.0
    %760 = vmatprep.subr.mxu0 0.0
    %761 = vmatpush1.msra.mxu0 0.0
    %762 = vmatprep.subr.mxu0 0.0
    %763 = vmatpush1.msra.mxu0 0.0
    %764 = vmatprep.subr.mxu0 0.0
    %765 = vmatpush1.msra.mxu0 0.0
    %766 = vmatprep.subr.mxu0 0.0
    %767 = vmatpush1.msra.mxu0 0.0
    %768 = vmatprep.subr.mxu0 0.0
    %769 = vmatpush1.msra.mxu0 0.0
    %770 = vmatprep.subr.mxu0 0.0
    %771 = vmatpush1.msra.mxu0 0.0
    %772 = vmatprep.subr.mxu0 0.0
    %773 = vmatpush1.msra.mxu0 0.0
    %774 = vmatprep.subr.mxu0 0.0
    %775 = vmatpush1.msra.mxu0 0.0
    %776 = vmatprep.subr.mxu0 0.0
    %777 = vmatpush1.msra.mxu0 0.0
    %778 = vmatprep.subr.mxu0 0.0
    %779 = vmatpush1.msra.mxu0 0.0
    %780 = vmatprep.subr.mxu0 0.0
    %781 = vmatpush1.msra.mxu0 0.0
    %782 = vmatprep.subr.mxu0 0.0
    %783 = vmatpush1.msra.mxu0 0.0
    %784 = vmatprep.subr.mxu0 0.0
    %785 = vmatpush1.msra.mxu0 0.0
    %786 = vmatprep.subr.mxu0 0.0
    %787 = vmatpush1.msra.mxu0 0.0
    %788 = vmatprep.subr.mxu0 0.0
    %789 = vmatpush1.msra.mxu0 0.0
    %790 = vmatprep.subr.mxu0 0.0
    %791 = vmatpush1.msra.mxu0 0.0
    %792 = vmatprep.mubr.f32.mxu0 0.0
    %793 = vmatmul.mubr.f32.gmra.mrb[0].mxu0 %v723
    %v794 = vpop.f32.mrb[0].mxu0
    %v795 = vadd.f32 %v718, %v794
    %v796 = vpop.f32.mrb[0].mxu0
    %v797 = vadd.f32 %v719, %v796
    %798 = vmatprep.mubr.f32.mxu0 0.0
    %799 = vmatmul.mubr.f32.gmra.mrb[0].mxu0 %v726
    %v800 = vpop.f32.mrb[0].mxu0
    %v801 = vadd.f32 %v720, %v800
    %v802 = vpop.f32.mrb[0].mxu0
    %v803 = vadd.f32 %v721, %v802
    %804 = vdwg.mxu0
    %805 = vrot.lane.b32.xlu0 %v714, 8
    %v806 = vpop.permute.xlu0 %805
    %807 = vrot.lane.b32.xlu0 %v715, 8
    %v808 = vpop.permute.xlu0 %807
    %vm809 = vcmp.lt.s32.totalorder %v226, 8
    %v810 = vsel %vm809, %v806, %v808
    %v811 = vsel %vm809, %v808, %v806
    %vm812 = vcmp.lt.s32.totalorder %v228, 8
    %vm813 = vcmp.lt.s32.totalorder %v229, 8
    %v814 = vsel %vm812, 1, 0
    %v815 = vsel %vm813, 1, 0
    %vm816 = vcmp.eq.s32.totalorder %v814, 1
    %vm817 = vcmp.eq.s32.totalorder %v815, 1
    %v818 = vsel %vm816, 0.0, %v811
    %v819 = vsel %vm817, 0.0, %v810
    %820 = vrot.lane.b32.xlu0 %v714, 4
    %v821 = vpop.permute.xlu0 %820
    %822 = vrot.lane.b32.xlu0 %v715, 4
    %v823 = vpop.permute.xlu0 %822
    %v824 = vsel %vm521, %v821, %v823
    %v825 = vsel %vm521, %v823, %v821
    %v826 = vsel %vm528, 0.0, %v825
    %v827 = vsel %vm529, 0.0, %v824
    %v828 = vld [vmem:[#allocation20] sm:$0xff]
    %v829 = vld [vmem:[#allocation20 + $0x8] sm:$0xff]
    %v830 = vld [vmem:[%s12] sm:$0xff]
    %v831 = vld [vmem:[%s12 + $0x8] sm:$0xff]
    %v832 = vld [vmem:[%s12 + $0x10] sm:$0xff]
    %v833 = vld [vmem:[%s12 + $0x18] sm:$0xff]
    %v835 = vsel %vm343, %v828, 0
    %v838 = vsel %vm343, %v829, 0
    %840 = vmatprep.subr.mxu0 %v819
    %841 = vmatpush1.msra.mxu0 %v818
    %842 = vmatprep.subr.mxu0 %v827
    %843 = vmatpush1.msra.mxu0 %v826
    %844 = vmatprep.subr.mxu0 %v715
    %845 = vmatpush1.msra.mxu0 %v714
    %846 = vmatprep.subr.mxu0 0.0
    %847 = vmatpush1.msra.mxu0 0.0
    %848 = vmatprep.subr.mxu0 0.0
    %849 = vmatpush1.msra.mxu0 0.0
    %850 = vmatprep.subr.mxu0 0.0
    %851 = vmatpush1.msra.mxu0 0.0
    %852 = vmatprep.subr.mxu0 0.0
    %853 = vmatpush1.msra.mxu0 0.0
    %854 = vmatprep.subr.mxu0 0.0
    %855 = vmatpush1.msra.mxu0 0.0
    %856 = vmatprep.subr.mxu0 0.0
    %857 = vmatpush1.msra.mxu0 0.0
    %858 = vmatprep.subr.mxu0 0.0
    %859 = vmatpush1.msra.mxu0 0.0
    %860 = vmatprep.subr.mxu0 0.0
    %861 = vmatpush1.msra.mxu0 0.0
    %862 = vmatprep.subr.mxu0 0.0
    %863 = vmatpush1.msra.mxu0 0.0
    %864 = vmatprep.subr.mxu0 0.0
    %865 = vmatpush1.msra.mxu0 0.0
    %866 = vmatprep.subr.mxu0 0.0
    %867 = vmatpush1.msra.mxu0 0.0
    %868 = vmatprep.subr.mxu0 0.0
    %869 = vmatpush1.msra.mxu0 0.0
    %870 = vmatprep.subr.mxu0 0.0
    %871 = vmatpush1.msra.mxu0 0.0
    %872 = vmatprep.subr.mxu0 0.0
    %873 = vmatpush1.msra.mxu0 0.0
    %874 = vmatprep.subr.mxu0 0.0
    %875 = vmatpush1.msra.mxu0 0.0
    %876 = vmatprep.subr.mxu0 0.0
    %877 = vmatpush1.msra.mxu0 0.0
    %878 = vmatprep.subr.mxu0 0.0
    %879 = vmatpush1.msra.mxu0 0.0
    %880 = vmatprep.subr.mxu0 0.0
    %881 = vmatpush1.msra.mxu0 0.0
    %882 = vmatprep.subr.mxu0 0.0
    %883 = vmatpush1.msra.mxu0 0.0
    %884 = vmatprep.subr.mxu0 0.0
    %885 = vmatpush1.msra.mxu0 0.0
    %886 = vmatprep.subr.mxu0 0.0
    %887 = vmatpush1.msra.mxu0 0.0
    %888 = vmatprep.subr.mxu0 0.0
    %889 = vmatpush1.msra.mxu0 0.0
    %890 = vmatprep.subr.mxu0 0.0
    %891 = vmatpush1.msra.mxu0 0.0
    %892 = vmatprep.subr.mxu0 0.0
    %893 = vmatpush1.msra.mxu0 0.0
    %894 = vmatprep.subr.mxu0 0.0
    %895 = vmatpush1.msra.mxu0 0.0
    %896 = vmatprep.subr.mxu0 0.0
    %897 = vmatpush1.msra.mxu0 0.0
    %898 = vmatprep.subr.mxu0 0.0
    %899 = vmatpush1.msra.mxu0 0.0
    %900 = vmatprep.subr.mxu0 0.0
    %901 = vmatpush1.msra.mxu0 0.0
    %902 = vmatprep.subr.mxu0 0.0
    %903 = vmatpush1.msra.mxu0 0.0
    %904 = vmatprep.mubr.f32.mxu0 0.0
    %905 = vmatmul.mubr.f32.gmra.mrb[0].mxu0 %v835
    %v906 = vpop.f32.mrb[0].mxu0
    %v907 = vadd.f32 %v830, %v906
    %v908 = vpop.f32.mrb[0].mxu0
    %v909 = vadd.f32 %v831, %v908
    %910 = vmatprep.mubr.f32.mxu0 0.0
    %911 = vmatmul.mubr.f32.gmra.mrb[0].mxu0 %v838
    %v912 = vpop.f32.mrb[0].mxu0
    %v913 = vadd.f32 %v832, %v912
    %v914 = vpop.f32.mrb[0].mxu0
    %v915 = vadd.f32 %v833, %v914
    %916 = vdwg.mxu0
    %v917 = vmax.f32 %v907, 0.0
    %v918 = vmax.f32 %v909, 0.0
    %v919 = vmax.f32 %v913, 0.0
    %v920 = vmax.f32 %v915, 0.0
    %921 = vrot.lane.b32.xlu0 %v917, 8
    %v922 = vpop.permute.xlu0 %921
    %923 = vrot.lane.b32.xlu0 %v919, 8
    %v924 = vpop.permute.xlu0 %923
    %925 = vrot.lane.b32.xlu0 %v918, 8
    %v926 = vpop.permute.xlu0 %925
    %927 = vrot.lane.b32.xlu0 %v920, 8
    %v928 = vpop.permute.xlu0 %927
    %v929 = vsel %vm809, %v922, %v926
    %v930 = vsel %vm809, %v924, %v928
    %v931 = vsel %vm809, %v926, %v922
    %v932 = vsel %vm809, %v928, %v924
    %v933 = vsel %vm816, 0.0, %v931
    %v934 = vsel %vm817, 0.0, %v929
    %v935 = vsel %vm816, 0.0, %v932
    %v936 = vsel %vm817, 0.0, %v930
    %937 = vrot.lane.b32.xlu0 %v917, 4
    %v938 = vpop.permute.xlu0 %937
    %939 = vrot.lane.b32.xlu0 %v919, 4
    %v940 = vpop.permute.xlu0 %939
    %941 = vrot.lane.b32.xlu0 %v918, 4
    %v942 = vpop.permute.xlu0 %941
    %943 = vrot.lane.b32.xlu0 %v920, 4
    %v944 = vpop.permute.xlu0 %943
    %v945 = vsel %vm521, %v938, %v942
    %v946 = vsel %vm521, %v940, %v944
    %v947 = vsel %vm521, %v942, %v938
    %v948 = vsel %vm521, %v944, %v940
    %v949 = vsel %vm528, 0.0, %v947
    %v950 = vsel %vm529, 0.0, %v945
    %v951 = vsel %vm528, 0.0, %v948
    %v952 = vsel %vm529, 0.0, %v946
    %v953 = vld [vmem:[#allocation22] sm:$0xff]
    %v954 = vld [vmem:[#allocation22 + $0x8] sm:$0xff]
    %v955 = vld [vmem:[%s14] sm:$0xff]
    %v956 = vld [vmem:[%s14 + $0x8] sm:$0xff]
    %v957 = vld [vmem:[%s14 + $0x10] sm:$0xff]
    %v958 = vld [vmem:[%s14 + $0x18] sm:$0xff]
    %vm959 = vcmask 392192
    %v961 = vsel %vm959, %v953, 0
    %v964 = vsel %vm959, %v954, 0
    %966 = vmatprep.subr.mxu0 %v934
    %967 = vmatpush1.msra.mxu0 %v933
    %968 = vmatprep.subr.mxu0 %v936
    %969 = vmatpush1.msra.mxu0 %v935
    %970 = vmatprep.subr.mxu0 %v950
    %971 = vmatpush1.msra.mxu0 %v949
    %972 = vmatprep.subr.mxu0 %v952
    %973 = vmatpush1.msra.mxu0 %v951
    %974 = vmatprep.subr.mxu0 %v918
    %975 = vmatpush1.msra.mxu0 %v917
    %976 = vmatprep.subr.mxu0 %v920
    %977 = vmatpush1.msra.mxu0 %v919
    %978 = vmatprep.subr.mxu0 0.0
    %979 = vmatpush1.msra.mxu0 0.0
    %980 = vmatprep.subr.mxu0 0.0
    %981 = vmatpush1.msra.mxu0 0.0
    %982 = vmatprep.subr.mxu0 0.0
    %983 = vmatpush1.msra.mxu0 0.0
    %984 = vmatprep.subr.mxu0 0.0
    %985 = vmatpush1.msra.mxu0 0.0
    %986 = vmatprep.subr.mxu0 0.0
    %987 = vmatpush1.msra.mxu0 0.0
    %988 = vmatprep.subr.mxu0 0.0
    %989 = vmatpush1.msra.mxu0 0.0
    %990 = vmatprep.subr.mxu0 0.0
    %991 = vmatpush1.msra.mxu0 0.0
    %992 = vmatprep.subr.mxu0 0.0
    %993 = vmatpush1.msra.mxu0 0.0
    %994 = vmatprep.subr.mxu0 0.0
    %995 = vmatpush1.msra.mxu0 0.0
    %996 = vmatprep.subr.mxu0 0.0
    %997 = vmatpush1.msra.mxu0 0.0
    %998 = vmatprep.subr.mxu0 0.0
    %999 = vmatpush1.msra.mxu0 0.0
    %1000 = vmatprep.subr.mxu0 0.0
    %1001 = vmatpush1.msra.mxu0 0.0
    %1002 = vmatprep.subr.mxu0 0.0
    %1003 = vmatpush1.msra.mxu0 0.0
    %1004 = vmatprep.subr.mxu0 0.0
    %1005 = vmatpush1.msra.mxu0 0.0
    %1006 = vmatprep.subr.mxu0 0.0
    %1007 = vmatpush1.msra.mxu0 0.0
    %1008 = vmatprep.subr.mxu0 0.0
    %1009 = vmatpush1.msra.mxu0 0.0
    %1010 = vmatprep.subr.mxu0 0.0
    %1011 = vmatpush1.msra.mxu0 0.0
    %1012 = vmatprep.subr.mxu0 0.0
    %1013 = vmatpush1.msra.mxu0 0.0
    %1014 = vmatprep.subr.mxu0 0.0
    %1015 = vmatpush1.msra.mxu0 0.0
    %1016 = vmatprep.subr.mxu0 0.0
    %1017 = vmatpush1.msra.mxu0 0.0
    %1018 = vmatprep.subr.mxu0 0.0
    %1019 = vmatpush1.msra.mxu0 0.0
    %1020 = vmatprep.subr.mxu0 0.0
    %1021 = vmatpush1.msra.mxu0 0.0
    %1022 = vmatprep.subr.mxu0 0.0
    %1023 = vmatpush1.msra.mxu0 0.0
    %1024 = vmatprep.subr.mxu0 0.0
    %1025 = vmatpush1.msra.mxu0 0.0
    %1026 = vmatprep.subr.mxu0 0.0
    %1027 = vmatpush1.msra.mxu0 0.0
    %1028 = vmatprep.subr.mxu0 0.0
    %1029 = vmatpush1.msra.mxu0 0.0
    %1030 = vmatprep.mubr.f32.mxu0 0.0
    %1031 = vmatmul.mubr.f32.gmra.mrb[0].mxu0 %v961
    %v1032 = vpop.f32.mrb[0].mxu0
    %v1033 = vadd.f32 %v955, %v1032
    %v1034 = vpop.f32.mrb[0].mxu0
    %v1035 = vadd.f32 %v956, %v1034
    %1036 = vmatprep.mubr.f32.mxu0 0.0
    %1037 = vmatmul.mubr.f32.gmra.mrb[0].mxu0 %v964
    %v1038 = vpop.f32.mrb[0].mxu0
    %v1039 = vadd.f32 %v957, %v1038
    %v1040 = vpop.f32.mrb[0].mxu0
    %v1041 = vadd.f32 %v958, %v1040
    %1042 = vdwg.mxu0
    %v1043 = vadd.f32 %v1033, %v795
    %v1044 = vadd.f32 %v1035, %v797
    %v1045 = vadd.f32 %v1039, %v801
    %v1046 = vadd.f32 %v1041, %v803
    %1047 = vst [vmem:[#allocation25] sm:$0xff] %v1043
    %1048 = vst [vmem:[#allocation25 + $0x8] sm:$0xff] %v1044
    %1049 = vst [vmem:[#allocation25 + $0x10] sm:$0xff] %v1045
    %1050 = vst [vmem:[#allocation25 + $0x18] sm:$0xff] %v1046
    // Predicated region
    $region126: #{tpu_custom_call.1} parent=1 // pred_check
      _
    $region127: #{tpu_custom_call.1} parent=1 // pred_check_branch
      %1052 = sbr.rel (0) target = $region129
    $region128: #{tpu_custom_call.1} parent=1 // pred_region
      %s1054 = ssub.s32 512, 512
      %1055 = vsyncadd [#allocation4], %s1054
      %s1056 = sshll.u32 [#allocation25], 4
      %s1057 = int_to_ptr.vmem [resolvable:$true] %s1056
      %1062 = dma.vmem_to_hbm [thread:$0]  %s1057, 512, %s17, [#allocation4], 256, 256, 16
    $region129: #{tpu_custom_call.1} parent=1 // pred_fallthru
      _
    // Predicated region
    $region130: #{tpu_custom_call.1} parent=1 // pred_check
      _
    $region131: #{tpu_custom_call.1} parent=1 // pred_check_branch
      %1064 = sbr.rel (0) target = $region133
    $region132: #{tpu_custom_call.1} parent=1 // pred_region
      %1065 = dma.done [#allocation4], 512
    $region133: #{tpu_custom_call.1} parent=1 // pred_fallthru
      _
    %1066 = vsyncpa [#allocation3], 1
    %1067 = vsyncpa [#allocation6], 1
    %1068 = vsyncpa [#allocation9], 1
    %1069 = vsyncpa [#allocation12], 1
    %1070 = vsyncpa [#allocation15], 1
    %1071 = vsyncpa [#allocation18], 1
    %1072 = vsyncpa [#allocation21], 1
    %1073 = vsyncpa [#allocation24], 1
    %1074 = vsyncpa [#allocation4], 1

</llo_original>
